<compile_context>
chip_gen: v7x
topology: tpu7x:2x2x1
jax: 0.10.0
libtpu: 0.0.40
codegen_flags: <defaults>
</compile_context>

<pallas_src>
import jax
import jax.numpy as jnp
from jax.experimental import pallas as pl
from jax.experimental.pallas import tpu as pltpu

IN_DIM = 784
HID_DIM = 1024
OUT_DIM = 10
N_PAD = 128   # 10 -> 128: lane-dense fc2 output; sliced back in the wrapper


def _round_up(n, m):
    return ((n + m - 1) // m) * m


def _is_v7x():
    try:
        kind = jax.devices()[0].device_kind.lower()
        return ("v7" in kind) or ("7x" in kind)
    except Exception:
        return False


def mlp_kernel(x_ref, w1_ref, w2_ref, o_ref):
    # fc1: [tm, 784] @ [784, 1024] -> [tm, 1024]   (bf16 in, f32 accumulate, MXU)
    h = jnp.dot(x_ref[...], w1_ref[...], preferred_element_type=jnp.float32)
    # ReLU on the f32 accumulator (VPU)
    h = jnp.maximum(h, 0.0)
    # fc2: [tm, 1024] @ [1024, 128] -> [tm, 128]   (cast back to bf16 for the MXU)
    o_ref[...] = jnp.dot(h.astype(w2_ref.dtype), w2_ref[...],
                         preferred_element_type=jnp.float32).astype(o_ref.dtype)


def prepare_params(w1, w2):
    """One-time param prep (hoisted out of the per-call path).

    w1: [1024, 784] (torch nn.Linear layout), w2: [10, 1024].
    Returns bf16 (w1t [784, 1024], w2p [1024, 128]) ready for the kernel.
    """
    w1t = jnp.asarray(w1).T.astype(jnp.bfloat16)                      # [784, 1024]
    w2t = jnp.asarray(w2).T.astype(jnp.bfloat16)                      # [1024, 10]
    w2p = jnp.pad(w2t, ((0, 0), (0, N_PAD - OUT_DIM)))                # [1024, 128]
    return w1t, w2p


def mlp_forward(x, w1t, w2p, *, tm=512):
    """x: [B, ...] (flattened to [B, 784]); w1t: bf16 [784, 1024]; w2p: bf16 [1024, 128].

    Returns float32 [B, 10] = relu(x @ W1^T) @ W2^T (bf16 inputs, f32 accumulation).
    """
    x2d = x.reshape(-1, IN_DIM)
    B = x2d.shape[0]

    # Batch tile: multiple of 16 (bf16 packed sublane tile), as large as possible
    # up to tm. Only manufacture a >=2-step grid on v7x (2 TensorCores); on
    # single-TC v5e/v6e extra grid steps are pure serial overhead.
    tm_eff = min(_round_up(tm, 16), _round_up(B, 16))
    if _is_v7x() and _round_up(B, tm_eff) // tm_eff < 2 and tm_eff >= 32:
        tm_eff = _round_up(tm_eff // 2, 16)
    B_pad = _round_up(B, tm_eff)
    grid = (B_pad // tm_eff,)

    # Single cheap pass over x: cast to bf16, pad batch rows only (no K padding).
    xp = x2d.astype(jnp.bfloat16)
    if B_pad != B:
        xp = jnp.pad(xp, ((0, B_pad - B), (0, 0)))

    flops = 2 * B_pad * (IN_DIM * HID_DIM + HID_DIM * N_PAD)
    bytes_accessed = (xp.size * 2 + w1t.size * 2 + w2p.size * 2
                      + B_pad * N_PAD * 4)

    out = pl.pallas_call(
        mlp_kernel,
        out_shape=jax.ShapeDtypeStruct((B_pad, N_PAD), jnp.float32),
        grid_spec=pltpu.PrefetchScalarGridSpec(
            num_scalar_prefetch=0,
            grid=grid,
            in_specs=[
                # batch tile of activations; last dim 784 == full array dim (legal)
                pl.BlockSpec((tm_eff, IN_DIM), lambda i: (i, 0)),
                # weights: full arrays, same block every step -> VMEM-resident
                pl.BlockSpec((IN_DIM, HID_DIM), lambda i: (0, 0)),
                pl.BlockSpec((HID_DIM, N_PAD), lambda i: (0, 0)),
            ],
            out_specs=pl.BlockSpec((tm_eff, N_PAD), lambda i: (i, 0)),
        ),
        compiler_params=pltpu.CompilerParams(
            dimension_semantics=("parallel",),
            vmem_limit_bytes=32 * 1024 * 1024),
        cost_estimate=pl.CostEstimate(flops=flops, transcendentals=0,
                                      bytes_accessed=bytes_accessed),
    )(xp, w1t, w2p)

    # TODO(synk): on v7x, CORE_PARALLEL / pl.core_map would shard the batch grid
    # across the 2 TensorCores; kept "parallel" here for portability.
    return out[:B, :OUT_DIM]


def init_params(key):
    k1, k2 = jax.random.split(key)
    # PyTorch nn.Linear weight shapes: fc1 (1024, 784), fc2 (10, 1024).
    w1 = jax.random.normal(k1, (HID_DIM, IN_DIM), jnp.float32) * (1.0 / IN_DIM ** 0.5)
    w2 = jax.random.normal(k2, (OUT_DIM, HID_DIM), jnp.float32) * (1.0 / HID_DIM ** 0.5)
    return w1, w2


if __name__ == "__main__":
    key = jax.random.PRNGKey(0)
    kx, kp = jax.random.split(key)

    # Small MNIST-like batch; reshaped to [B, 784] inside the wrapper.
    B = 16
    x = jax.random.normal(kx, (B, 1, 28, 28), jnp.float32)
    w1, w2 = init_params(kp)

    # One-time weight prep (transpose + bf16 cast + lane pad), outside the call path.
    w1t, w2p = prepare_params(w1, w2)

    out = mlp_forward(x, w1t, w2p)
    out = jax.block_until_ready(out)

    # Reference in plain JAX, mirroring the kernel's bf16-in / f32-accumulate math.
    x2d = x.reshape(-1, IN_DIM)
    xq = x2d.astype(jnp.bfloat16).astype(jnp.float32)
    w1q = w1.T.astype(jnp.bfloat16).astype(jnp.float32)
    w2q = w2.T.astype(jnp.bfloat16).astype(jnp.float32)
    h = jnp.maximum(xq @ w1q, 0.0)
    ref = h.astype(jnp.bfloat16).astype(jnp.float32) @ w2q

    assert out.shape == (B, OUT_DIM)
    assert jnp.allclose(out, ref, atol=2e-2, rtol=2e-2), \
        float(jnp.max(jnp.abs(out - ref)))

    print("KERNEL_OK")
</pallas_src>

<mosaic_0001>
module attributes {stable_mosaic.version = 11 : i64} {
  func.func @mlp_kernel(%arg0: i32, %arg1: memref<16x784xbf16, #tpu.memory_space<vmem>>, %arg2: memref<784x1024xbf16, #tpu.memory_space<vmem>>, %arg3: memref<1024x128xbf16, #tpu.memory_space<vmem>>, %arg4: memref<16x128xf32, #tpu.memory_space<vmem>>) attributes {dimension_semantics = [#tpu.dimension_semantics<parallel>], iteration_bounds = array<i64: 1>, scalar_prefetch = 0 : i64, scratch_operands = 0 : i64, tpu.core_type = #tpu.core_type<tc>, window_params = [{transform_indices = @transform_0, window_bounds = array<i64: 16, 784>}, {pipeline_mode = #tpu.pipeline_mode<synchronous>, transform_indices = @transform_1, window_bounds = array<i64: 784, 1024>}, {pipeline_mode = #tpu.pipeline_mode<synchronous>, transform_indices = @transform_2, window_bounds = array<i64: 1024, 128>}, {transform_indices = @transform_3, window_bounds = array<i64: 16, 128>}]} {
    %c0 = arith.constant 0 : index
    %c0_0 = arith.constant 0 : index
    %0 = vector.load %arg1[%c0, %c0_0] : memref<16x784xbf16, #tpu.memory_space<vmem>>, vector<16x784xbf16>
    %c0_1 = arith.constant 0 : index
    %c0_2 = arith.constant 0 : index
    %1 = vector.load %arg2[%c0_1, %c0_2] : memref<784x1024xbf16, #tpu.memory_space<vmem>>, vector<784x1024xbf16>
    %cst = arith.constant dense<0.000000e+00> : vector<16x1024xf32>
    %2 = tpu.matmul %0, %1, %cst {dimension_numbers = #tpu.dot_dimension_numbers<[1], [0], [0], [1], [0, 0, 1, 1], [], []>} : vector<16x784xbf16>, vector<784x1024xbf16>, vector<16x1024xf32> -> vector<16x1024xf32>
    %cst_3 = arith.constant 0.000000e+00 : f32
    %3 = vector.broadcast %cst_3 : f32 to vector<16x1024xf32>
    %4 = arith.maximumf %2, %3 : vector<16x1024xf32>
    %5 = arith.truncf %4 : vector<16x1024xf32> to vector<16x1024xbf16>
    %c0_4 = arith.constant 0 : index
    %c0_5 = arith.constant 0 : index
    %6 = vector.load %arg3[%c0_4, %c0_5] : memref<1024x128xbf16, #tpu.memory_space<vmem>>, vector<1024x128xbf16>
    %cst_6 = arith.constant dense<0.000000e+00> : vector<16x128xf32>
    %7 = tpu.matmul %5, %6, %cst_6 {dimension_numbers = #tpu.dot_dimension_numbers<[1], [0], [0], [1], [0, 0, 1, 1], [], []>} : vector<16x1024xbf16>, vector<1024x128xbf16>, vector<16x128xf32> -> vector<16x128xf32>
    %c0_7 = arith.constant 0 : index
    %c0_8 = arith.constant 0 : index
    %8 = vector.load %arg4[%c0_7, %c0_8] : memref<16x128xf32, #tpu.memory_space<vmem>>, vector<16x128xf32>
    tpu.vector_store %arg4[%c0_7, %c0_8], %7 {strides = array<i32>} : memref<16x128xf32, #tpu.memory_space<vmem>>, vector<16x128xf32>,
    return
  }
  func.func @transform_0(%arg0: i32) -> (i32, i32) {
    %c0_i32 = arith.constant 0 : i32
    %c0_i32_0 = arith.constant 0 : i32
    return %arg0, %c0_i32 : i32, i32
  }
  func.func @transform_1(%arg0: i32) -> (i32, i32) {
    %c0_i32 = arith.constant 0 : i32
    %c0_i32_0 = arith.constant 0 : i32
    %c0_i32_1 = arith.constant 0 : i32
    return %c0_i32, %c0_i32_0 : i32, i32
  }
  func.func @transform_2(%arg0: i32) -> (i32, i32) {
    %c0_i32 = arith.constant 0 : i32
    %c0_i32_0 = arith.constant 0 : i32
    %c0_i32_1 = arith.constant 0 : i32
    return %c0_i32, %c0_i32_0 : i32, i32
  }
  func.func @transform_3(%arg0: i32) -> (i32, i32) {
    %c0_i32 = arith.constant 0 : i32
    %c0_i32_0 = arith.constant 0 : i32
    return %arg0, %c0_i32 : i32, i32
  }
}

</mosaic_0001>

<llo_original>
// kernel: tpu_custom_call.1
$region0: #{tpu_custom_call.1}
  #allocation0 [shape = 'u32[]', space=smem, size = 0x4, offset = 0x4, fixed_abs, tag = 'smem constant byte address 0x4 - core index']
  #allocation1 [shape = 'u32[144,128]{1,0:T(1,128)}', space=vmem, size = 0x12000, scoped, tag = 'internal scratch']
  %s0 = inlined_call_operand.hbm [shape: bf16[16,784], index: 0, kind: input, shape index: {}]
  %s1 = inlined_call_operand.hbm [shape: bf16[784,1024], index: 1, kind: input, shape index: {}]
  %s2 = inlined_call_operand.hbm [shape: bf16[1024,128], index: 2, kind: input, shape index: {}]
  %s3 = inlined_call_operand.hbm [shape: f32[16,128], index: 3, kind: output, shape index: {}]
  %s4 = sld [smem:[#allocation0]]
  $region34: #{tpu_custom_call.1} parent=0
    _
  %s6 = ssub.s32 1, %s4
  %s7 = scalar_select 0, %s6, %s4
  $region1: #{tpu_custom_call.1} parent=0
    #allocation2 [shape = 'u8[28672]{0}', space=vmem, size = 0x7000, scoped, tag = 'input window, operand 0, single buffered']
    #allocation3 [shape = 's32[1]{0}', space=sflag, size = 0x4, scoped, tag = 'scoped memory for tpu_custom_call.1']
    #allocation4 [shape = 's32[1]{0}', space=sflag, size = 0x4, scoped, tag = 'scoped memory for tpu_custom_call.1']
    #allocation5 [shape = 'u8[1605632]{0}', space=vmem, size = 0x188000, scoped, tag = 'input window, operand 1, single buffered']
    #allocation6 [shape = 's32[1]{0}', space=sflag, size = 0x4, scoped, tag = 'scoped memory for tpu_custom_call.1']
    #allocation7 [shape = 'u8[262144]{0}', space=vmem, size = 0x40000, scoped, tag = 'input window, operand 2, single buffered']
    #allocation8 [shape = 'u8[8192]{0}', space=vmem, size = 0x2000, scoped, tag = 'output window, operand 0, single buffered']
    %8 = vsyncpa [#allocation3], 0
    %9 = vsyncpa [#allocation6], 0
    %10 = vsyncpa [#allocation4], 0
    // Predicated region
    $region2: #{tpu_custom_call.1} parent=1 // pred_check
      _
    $region3: #{tpu_custom_call.1} parent=1 // pred_check_branch
      %12 = sbr.rel (0) target = $region5
    $region4: #{tpu_custom_call.1} parent=1 // pred_region
      %s14 = ssub.s32 896, 896
      %15 = vsyncadd [#allocation3], %s14
      %s16 = sshll.u32 [#allocation2], 4
      %s17 = int_to_ptr.vmem [resolvable:$true] %s16
      %22 = dma.hbm_to_vmem [thread:$0]  %s0, 896, %s17, [#allocation3], 448, 448, 28
    $region5: #{tpu_custom_call.1} parent=1 // pred_fallthru
      _
    // Predicated region
    $region6: #{tpu_custom_call.1} parent=1 // pred_check
      _
    $region7: #{tpu_custom_call.1} parent=1 // pred_check_branch
      %24 = sbr.rel (0) target = $region9
    $region8: #{tpu_custom_call.1} parent=1 // pred_region
      %s26 = ssub.s32 50176, 50176
      %27 = vsyncadd [#allocation6], %s26
      %s28 = sshll.u32 [#allocation5], 4
      %s29 = int_to_ptr.vmem [resolvable:$true] %s28
      %34 = dma.hbm_to_vmem [thread:$0]  %s1, 50176, %s29, [#allocation6], 512, 512, 32
    $region9: #{tpu_custom_call.1} parent=1 // pred_fallthru
      _
    // Predicated region
    $region10: #{tpu_custom_call.1} parent=1 // pred_check
      _
    $region11: #{tpu_custom_call.1} parent=1 // pred_check_branch
      %36 = sbr.rel (0) target = $region13
    $region12: #{tpu_custom_call.1} parent=1 // pred_region
      %s38 = ssub.s32 8192, 8192
      %39 = vsyncadd [#allocation6], %s38
      %s40 = sshll.u32 [#allocation7], 4
      %s41 = int_to_ptr.vmem [resolvable:$true] %s40
      %46 = dma.hbm_to_vmem [thread:$0]  %s2, 8192, %s41, [#allocation6], 64, 64, 4
    $region13: #{tpu_custom_call.1} parent=1 // pred_fallthru
      _
    // Predicated region
    $region14: #{tpu_custom_call.1} parent=1 // pred_check
      _
    $region15: #{tpu_custom_call.1} parent=1 // pred_check_branch
      %48 = sbr.rel (0) target = $region17
    $region16: #{tpu_custom_call.1} parent=1 // pred_region
      %49 = dma.done [#allocation3], 896
    $region17: #{tpu_custom_call.1} parent=1 // pred_fallthru
      _
    // Predicated region
    $region18: #{tpu_custom_call.1} parent=1 // pred_check
      _
    $region19: #{tpu_custom_call.1} parent=1 // pred_check_branch
      %51 = sbr.rel (0) target = $region21
    $region20: #{tpu_custom_call.1} parent=1 // pred_region
      %52 = dma.done [#allocation6], 50176
    $region21: #{tpu_custom_call.1} parent=1 // pred_fallthru
      _
    // Predicated region
    $region22: #{tpu_custom_call.1} parent=1 // pred_check
      _
    $region23: #{tpu_custom_call.1} parent=1 // pred_check_branch
      %54 = sbr.rel (0) target = $region25
    $region24: #{tpu_custom_call.1} parent=1 // pred_region
      %55 = dma.done [#allocation6], 8192
    $region25: #{tpu_custom_call.1} parent=1 // pred_fallthru
      _
    %v57 = vld [vmem:[#allocation2] sm:$0xff]
    %v58 = vld [vmem:[#allocation2 + $0x8] sm:$0xff]
    %v59 = vld [vmem:[#allocation2 + $0x10] sm:$0xff]
    %v60 = vld [vmem:[#allocation2 + $0x18] sm:$0xf]
    %v61 = vld [vmem:[#allocation2 + $0x1c] sm:$0xff]
    %v62 = vld [vmem:[#allocation2 + $0x24] sm:$0xff]
    %v63 = vld [vmem:[#allocation2 + $0x2c] sm:$0xff]
    %v64 = vld [vmem:[#allocation2 + $0x34] sm:$0xf]
    %v65 = vld [vmem:[#allocation5] sm:$0xff]
    %v66 = vld [vmem:[#allocation5 + $0x8] sm:$0xff]
    %v67 = vld [vmem:[#allocation5 + $0x10] sm:$0xff]
    %v68 = vld [vmem:[#allocation5 + $0x18] sm:$0xff]
    %v69 = vld [vmem:[#allocation5 + $0x20] sm:$0xff]
    %v70 = vld [vmem:[#allocation5 + $0x28] sm:$0xff]
    %v71 = vld [vmem:[#allocation5 + $0x30] sm:$0xff]
    %v72 = vld [vmem:[#allocation5 + $0x38] sm:$0xff]
    %v73 = vld [vmem:[#allocation5 + $0x40] sm:$0xff]
    %v74 = vld [vmem:[#allocation5 + $0x48] sm:$0xff]
    %v75 = vld [vmem:[#allocation5 + $0x50] sm:$0xff]
    %v76 = vld [vmem:[#allocation5 + $0x58] sm:$0xff]
    %v77 = vld [vmem:[#allocation5 + $0x60] sm:$0xff]
    %v78 = vld [vmem:[#allocation5 + $0x68] sm:$0xff]
    %v79 = vld [vmem:[#allocation5 + $0x70] sm:$0xff]
    %v80 = vld [vmem:[#allocation5 + $0x78] sm:$0xff]
    %v81 = vld [vmem:[#allocation5 + $0x80] sm:$0xff]
    %v82 = vld [vmem:[#allocation5 + $0x88] sm:$0xff]
    %v83 = vld [vmem:[#allocation5 + $0x90] sm:$0xff]
    %v84 = vld [vmem:[#allocation5 + $0x98] sm:$0xff]
    %v85 = vld [vmem:[#allocation5 + $0xa0] sm:$0xff]
    %v86 = vld [vmem:[#allocation5 + $0xa8] sm:$0xff]
    %v87 = vld [vmem:[#allocation5 + $0xb0] sm:$0xff]
    %v88 = vld [vmem:[#allocation5 + $0xb8] sm:$0xff]
    %v89 = vld [vmem:[#allocation5 + $0xc0] sm:$0xff]
    %v90 = vld [vmem:[#allocation5 + $0xc8] sm:$0xff]
    %v91 = vld [vmem:[#allocation5 + $0xd0] sm:$0xff]
    %v92 = vld [vmem:[#allocation5 + $0xd8] sm:$0xff]
    %v93 = vld [vmem:[#allocation5 + $0xe0] sm:$0xff]
    %v94 = vld [vmem:[#allocation5 + $0xe8] sm:$0xff]
    %v95 = vld [vmem:[#allocation5 + $0xf0] sm:$0xff]
    %v96 = vld [vmem:[#allocation5 + $0xf8] sm:$0xff]
    %v97 = vld [vmem:[#allocation5 + $0x100] sm:$0xff]
    %v98 = vld [vmem:[#allocation5 + $0x108] sm:$0xff]
    %v99 = vld [vmem:[#allocation5 + $0x110] sm:$0xff]
    %v100 = vld [vmem:[#allocation5 + $0x118] sm:$0xff]
    %v101 = vld [vmem:[#allocation5 + $0x120] sm:$0xff]
    %v102 = vld [vmem:[#allocation5 + $0x128] sm:$0xff]
    %v103 = vld [vmem:[#allocation5 + $0x130] sm:$0xff]
    %v104 = vld [vmem:[#allocation5 + $0x138] sm:$0xff]
    %v105 = vld [vmem:[#allocation5 + $0x140] sm:$0xff]
    %v106 = vld [vmem:[#allocation5 + $0x148] sm:$0xff]
    %v107 = vld [vmem:[#allocation5 + $0x150] sm:$0xff]
    %v108 = vld [vmem:[#allocation5 + $0x158] sm:$0xff]
    %v109 = vld [vmem:[#allocation5 + $0x160] sm:$0xff]
    %v110 = vld [vmem:[#allocation5 + $0x168] sm:$0xff]
    %v111 = vld [vmem:[#allocation5 + $0x170] sm:$0xff]
    %v112 = vld [vmem:[#allocation5 + $0x178] sm:$0xff]
    %v113 = vld [vmem:[#allocation5 + $0x180] sm:$0xff]
    %v114 = vld [vmem:[#allocation5 + $0x188] sm:$0xff]
    %v115 = vld [vmem:[#allocation5 + $0x190] sm:$0xff]
    %v116 = vld [vmem:[#allocation5 + $0x198] sm:$0xff]
    %v117 = vld [vmem:[#allocation5 + $0x1a0] sm:$0xff]
    %v118 = vld [vmem:[#allocation5 + $0x1a8] sm:$0xff]
    %v119 = vld [vmem:[#allocation5 + $0x1b0] sm:$0xff]
    %v120 = vld [vmem:[#allocation5 + $0x1b8] sm:$0xff]
    %v121 = vld [vmem:[#allocation5 + $0x1c0] sm:$0xff]
    %v122 = vld [vmem:[#allocation5 + $0x1c8] sm:$0xff]
    %v123 = vld [vmem:[#allocation5 + $0x1d0] sm:$0xff]
    %v124 = vld [vmem:[#allocation5 + $0x1d8] sm:$0xff]
    %v125 = vld [vmem:[#allocation5 + $0x1e0] sm:$0xff]
    %v126 = vld [vmem:[#allocation5 + $0x1e8] sm:$0xff]
    %v127 = vld [vmem:[#allocation5 + $0x1f0] sm:$0xff]
    %v128 = vld [vmem:[#allocation5 + $0x1f8] sm:$0xff]
    %v129 = vld [vmem:[#allocation5 + $0x200] sm:$0xff]
    %v130 = vld [vmem:[#allocation5 + $0x208] sm:$0xff]
    %v131 = vld [vmem:[#allocation5 + $0x210] sm:$0xff]
    %v132 = vld [vmem:[#allocation5 + $0x218] sm:$0xff]
    %v133 = vld [vmem:[#allocation5 + $0x220] sm:$0xff]
    %v134 = vld [vmem:[#allocation5 + $0x228] sm:$0xff]
    %v135 = vld [vmem:[#allocation5 + $0x230] sm:$0xff]
    %v136 = vld [vmem:[#allocation5 + $0x238] sm:$0xff]
    %v137 = vld [vmem:[#allocation5 + $0x240] sm:$0xff]
    %v138 = vld [vmem:[#allocation5 + $0x248] sm:$0xff]
    %v139 = vld [vmem:[#allocation5 + $0x250] sm:$0xff]
    %v140 = vld [vmem:[#allocation5 + $0x258] sm:$0xff]
    %v141 = vld [vmem:[#allocation5 + $0x260] sm:$0xff]
    %v142 = vld [vmem:[#allocation5 + $0x268] sm:$0xff]
    %v143 = vld [vmem:[#allocation5 + $0x270] sm:$0xff]
    %v144 = vld [vmem:[#allocation5 + $0x278] sm:$0xff]
    %v145 = vld [vmem:[#allocation5 + $0x280] sm:$0xff]
    %v146 = vld [vmem:[#allocation5 + $0x288] sm:$0xff]
    %v147 = vld [vmem:[#allocation5 + $0x290] sm:$0xff]
    %v148 = vld [vmem:[#allocation5 + $0x298] sm:$0xff]
    %v149 = vld [vmem:[#allocation5 + $0x2a0] sm:$0xff]
    %v150 = vld [vmem:[#allocation5 + $0x2a8] sm:$0xff]
    %v151 = vld [vmem:[#allocation5 + $0x2b0] sm:$0xff]
    %v152 = vld [vmem:[#allocation5 + $0x2b8] sm:$0xff]
    %v153 = vld [vmem:[#allocation5 + $0x2c0] sm:$0xff]
    %v154 = vld [vmem:[#allocation5 + $0x2c8] sm:$0xff]
    %v155 = vld [vmem:[#allocation5 + $0x2d0] sm:$0xff]
    %v156 = vld [vmem:[#allocation5 + $0x2d8] sm:$0xff]
    %v157 = vld [vmem:[#allocation5 + $0x2e0] sm:$0xff]
    %v158 = vld [vmem:[#allocation5 + $0x2e8] sm:$0xff]
    %v159 = vld [vmem:[#allocation5 + $0x2f0] sm:$0xff]
    %v160 = vld [vmem:[#allocation5 + $0x2f8] sm:$0xff]
    %v161 = vld [vmem:[#allocation5 + $0x300] sm:$0xff]
    %v162 = vld [vmem:[#allocation5 + $0x308] sm:$0xff]
    %v163 = vld [vmem:[#allocation5 + $0x310] sm:$0xff]
    %v164 = vld [vmem:[#allocation5 + $0x318] sm:$0xff]
    %v165 = vld [vmem:[#allocation5 + $0x320] sm:$0xff]
    %v166 = vld [vmem:[#allocation5 + $0x328] sm:$0xff]
    %v167 = vld [vmem:[#allocation5 + $0x330] sm:$0xff]
    %v168 = vld [vmem:[#allocation5 + $0x338] sm:$0xff]
    %v169 = vld [vmem:[#allocation5 + $0x340] sm:$0xff]
    %v170 = vld [vmem:[#allocation5 + $0x348] sm:$0xff]
    %v171 = vld [vmem:[#allocation5 + $0x350] sm:$0xff]
    %v172 = vld [vmem:[#allocation5 + $0x358] sm:$0xff]
    %v173 = vld [vmem:[#allocation5 + $0x360] sm:$0xff]
    %v174 = vld [vmem:[#allocation5 + $0x368] sm:$0xff]
    %v175 = vld [vmem:[#allocation5 + $0x370] sm:$0xff]
    %v176 = vld [vmem:[#allocation5 + $0x378] sm:$0xff]
    %v177 = vld [vmem:[#allocation5 + $0x380] sm:$0xff]
    %v178 = vld [vmem:[#allocation5 + $0x388] sm:$0xff]
    %v179 = vld [vmem:[#allocation5 + $0x390] sm:$0xff]
    %v180 = vld [vmem:[#allocation5 + $0x398] sm:$0xff]
    %v181 = vld [vmem:[#allocation5 + $0x3a0] sm:$0xff]
    %v182 = vld [vmem:[#allocation5 + $0x3a8] sm:$0xff]
    %v183 = vld [vmem:[#allocation5 + $0x3b0] sm:$0xff]
    %v184 = vld [vmem:[#allocation5 + $0x3b8] sm:$0xff]
    %v185 = vld [vmem:[#allocation5 + $0x3c0] sm:$0xff]
    %v186 = vld [vmem:[#allocation5 + $0x3c8] sm:$0xff]
    %v187 = vld [vmem:[#allocation5 + $0x3d0] sm:$0xff]
    %v188 = vld [vmem:[#allocation5 + $0x3d8] sm:$0xff]
    %v189 = vld [vmem:[#allocation5 + $0x3e0] sm:$0xff]
    %v190 = vld [vmem:[#allocation5 + $0x3e8] sm:$0xff]
    %v191 = vld [vmem:[#allocation5 + $0x3f0] sm:$0xff]
    %v192 = vld [vmem:[#allocation5 + $0x3f8] sm:$0xff]
    %v193 = vld [vmem:[#allocation5 + $0x400] sm:$0xff]
    %v194 = vld [vmem:[#allocation5 + $0x408] sm:$0xff]
    %v195 = vld [vmem:[#allocation5 + $0x410] sm:$0xff]
    %v196 = vld [vmem:[#allocation5 + $0x418] sm:$0xff]
    %v197 = vld [vmem:[#allocation5 + $0x420] sm:$0xff]
    %v198 = vld [vmem:[#allocation5 + $0x428] sm:$0xff]
    %v199 = vld [vmem:[#allocation5 + $0x430] sm:$0xff]
    %v200 = vld [vmem:[#allocation5 + $0x438] sm:$0xff]
    %v201 = vld [vmem:[#allocation5 + $0x440] sm:$0xff]
    %v202 = vld [vmem:[#allocation5 + $0x448] sm:$0xff]
    %v203 = vld [vmem:[#allocation5 + $0x450] sm:$0xff]
    %v204 = vld [vmem:[#allocation5 + $0x458] sm:$0xff]
    %v205 = vld [vmem:[#allocation5 + $0x460] sm:$0xff]
    %v206 = vld [vmem:[#allocation5 + $0x468] sm:$0xff]
    %v207 = vld [vmem:[#allocation5 + $0x470] sm:$0xff]
    %v208 = vld [vmem:[#allocation5 + $0x478] sm:$0xff]
    %v209 = vld [vmem:[#allocation5 + $0x480] sm:$0xff]
    %v210 = vld [vmem:[#allocation5 + $0x488] sm:$0xff]
    %v211 = vld [vmem:[#allocation5 + $0x490] sm:$0xff]
    %v212 = vld [vmem:[#allocation5 + $0x498] sm:$0xff]
    %v213 = vld [vmem:[#allocation5 + $0x4a0] sm:$0xff]
    %v214 = vld [vmem:[#allocation5 + $0x4a8] sm:$0xff]
    %v215 = vld [vmem:[#allocation5 + $0x4b0] sm:$0xff]
    %v216 = vld [vmem:[#allocation5 + $0x4b8] sm:$0xff]
    %v217 = vld [vmem:[#allocation5 + $0x4c0] sm:$0xff]
    %v218 = vld [vmem:[#allocation5 + $0x4c8] sm:$0xff]
    %v219 = vld [vmem:[#allocation5 + $0x4d0] sm:$0xff]
    %v220 = vld [vmem:[#allocation5 + $0x4d8] sm:$0xff]
    %v221 = vld [vmem:[#allocation5 + $0x4e0] sm:$0xff]
    %v222 = vld [vmem:[#allocation5 + $0x4e8] sm:$0xff]
    %v223 = vld [vmem:[#allocation5 + $0x4f0] sm:$0xff]
    %v224 = vld [vmem:[#allocation5 + $0x4f8] sm:$0xff]
    %v225 = vld [vmem:[#allocation5 + $0x500] sm:$0xff]
    %v226 = vld [vmem:[#allocation5 + $0x508] sm:$0xff]
    %v227 = vld [vmem:[#allocation5 + $0x510] sm:$0xff]
    %v228 = vld [vmem:[#allocation5 + $0x518] sm:$0xff]
    %v229 = vld [vmem:[#allocation5 + $0x520] sm:$0xff]
    %v230 = vld [vmem:[#allocation5 + $0x528] sm:$0xff]
    %v231 = vld [vmem:[#allocation5 + $0x530] sm:$0xff]
    %v232 = vld [vmem:[#allocation5 + $0x538] sm:$0xff]
    %v233 = vld [vmem:[#allocation5 + $0x540] sm:$0xff]
    %v234 = vld [vmem:[#allocation5 + $0x548] sm:$0xff]
    %v235 = vld [vmem:[#allocation5 + $0x550] sm:$0xff]
    %v236 = vld [vmem:[#allocation5 + $0x558] sm:$0xff]
    %v237 = vld [vmem:[#allocation5 + $0x560] sm:$0xff]
    %v238 = vld [vmem:[#allocation5 + $0x568] sm:$0xff]
    %v239 = vld [vmem:[#allocation5 + $0x570] sm:$0xff]
    %v240 = vld [vmem:[#allocation5 + $0x578] sm:$0xff]
    %v241 = vld [vmem:[#allocation5 + $0x580] sm:$0xff]
    %v242 = vld [vmem:[#allocation5 + $0x588] sm:$0xff]
    %v243 = vld [vmem:[#allocation5 + $0x590] sm:$0xff]
    %v244 = vld [vmem:[#allocation5 + $0x598] sm:$0xff]
    %v245 = vld [vmem:[#allocation5 + $0x5a0] sm:$0xff]
    %v246 = vld [vmem:[#allocation5 + $0x5a8] sm:$0xff]
    %v247 = vld [vmem:[#allocation5 + $0x5b0] sm:$0xff]
    %v248 = vld [vmem:[#allocation5 + $0x5b8] sm:$0xff]
    %v249 = vld [vmem:[#allocation5 + $0x5c0] sm:$0xff]
    %v250 = vld [vmem:[#allocation5 + $0x5c8] sm:$0xff]
    %v251 = vld [vmem:[#allocation5 + $0x5d0] sm:$0xff]
    %v252 = vld [vmem:[#allocation5 + $0x5d8] sm:$0xff]
    %v253 = vld [vmem:[#allocation5 + $0x5e0] sm:$0xff]
    %v254 = vld [vmem:[#allocation5 + $0x5e8] sm:$0xff]
    %v255 = vld [vmem:[#allocation5 + $0x5f0] sm:$0xff]
    %v256 = vld [vmem:[#allocation5 + $0x5f8] sm:$0xff]
    %v257 = vld [vmem:[#allocation5 + $0x600] sm:$0xff]
    %v258 = vld [vmem:[#allocation5 + $0x608] sm:$0xff]
    %v259 = vld [vmem:[#allocation5 + $0x610] sm:$0xff]
    %v260 = vld [vmem:[#allocation5 + $0x618] sm:$0xff]
    %v261 = vld [vmem:[#allocation5 + $0x620] sm:$0xff]
    %v262 = vld [vmem:[#allocation5 + $0x628] sm:$0xff]
    %v263 = vld [vmem:[#allocation5 + $0x630] sm:$0xff]
    %v264 = vld [vmem:[#allocation5 + $0x638] sm:$0xff]
    %v265 = vld [vmem:[#allocation5 + $0x640] sm:$0xff]
    %v266 = vld [vmem:[#allocation5 + $0x648] sm:$0xff]
    %v267 = vld [vmem:[#allocation5 + $0x650] sm:$0xff]
    %v268 = vld [vmem:[#allocation5 + $0x658] sm:$0xff]
    %v269 = vld [vmem:[#allocation5 + $0x660] sm:$0xff]
    %v270 = vld [vmem:[#allocation5 + $0x668] sm:$0xff]
    %v271 = vld [vmem:[#allocation5 + $0x670] sm:$0xff]
    %v272 = vld [vmem:[#allocation5 + $0x678] sm:$0xff]
    %v273 = vld [vmem:[#allocation5 + $0x680] sm:$0xff]
    %v274 = vld [vmem:[#allocation5 + $0x688] sm:$0xff]
    %v275 = vld [vmem:[#allocation5 + $0x690] sm:$0xff]
    %v276 = vld [vmem:[#allocation5 + $0x698] sm:$0xff]
    %v277 = vld [vmem:[#allocation5 + $0x6a0] sm:$0xff]
    %v278 = vld [vmem:[#allocation5 + $0x6a8] sm:$0xff]
    %v279 = vld [vmem:[#allocation5 + $0x6b0] sm:$0xff]
    %v280 = vld [vmem:[#allocation5 + $0x6b8] sm:$0xff]
    %v281 = vld [vmem:[#allocation5 + $0x6c0] sm:$0xff]
    %v282 = vld [vmem:[#allocation5 + $0x6c8] sm:$0xff]
    %v283 = vld [vmem:[#allocation5 + $0x6d0] sm:$0xff]
    %v284 = vld [vmem:[#allocation5 + $0x6d8] sm:$0xff]
    %v285 = vld [vmem:[#allocation5 + $0x6e0] sm:$0xff]
    %v286 = vld [vmem:[#allocation5 + $0x6e8] sm:$0xff]
    %v287 = vld [vmem:[#allocation5 + $0x6f0] sm:$0xff]
    %v288 = vld [vmem:[#allocation5 + $0x6f8] sm:$0xff]
    %v289 = vld [vmem:[#allocation5 + $0x700] sm:$0xff]
    %v290 = vld [vmem:[#allocation5 + $0x708] sm:$0xff]
    %v291 = vld [vmem:[#allocation5 + $0x710] sm:$0xff]
    %v292 = vld [vmem:[#allocation5 + $0x718] sm:$0xff]
    %v293 = vld [vmem:[#allocation5 + $0x720] sm:$0xff]
    %v294 = vld [vmem:[#allocation5 + $0x728] sm:$0xff]
    %v295 = vld [vmem:[#allocation5 + $0x730] sm:$0xff]
    %v296 = vld [vmem:[#allocation5 + $0x738] sm:$0xff]
    %v297 = vld [vmem:[#allocation5 + $0x740] sm:$0xff]
    %v298 = vld [vmem:[#allocation5 + $0x748] sm:$0xff]
    %v299 = vld [vmem:[#allocation5 + $0x750] sm:$0xff]
    %v300 = vld [vmem:[#allocation5 + $0x758] sm:$0xff]
    %v301 = vld [vmem:[#allocation5 + $0x760] sm:$0xff]
    %v302 = vld [vmem:[#allocation5 + $0x768] sm:$0xff]
    %v303 = vld [vmem:[#allocation5 + $0x770] sm:$0xff]
    %v304 = vld [vmem:[#allocation5 + $0x778] sm:$0xff]
    %v305 = vld [vmem:[#allocation5 + $0x780] sm:$0xff]
    %v306 = vld [vmem:[#allocation5 + $0x788] sm:$0xff]
    %v307 = vld [vmem:[#allocation5 + $0x790] sm:$0xff]
    %v308 = vld [vmem:[#allocation5 + $0x798] sm:$0xff]
    %v309 = vld [vmem:[#allocation5 + $0x7a0] sm:$0xff]
    %v310 = vld [vmem:[#allocation5 + $0x7a8] sm:$0xff]
    %v311 = vld [vmem:[#allocation5 + $0x7b0] sm:$0xff]
    %v312 = vld [vmem:[#allocation5 + $0x7b8] sm:$0xff]
    %v313 = vld [vmem:[#allocation5 + $0x7c0] sm:$0xff]
    %v314 = vld [vmem:[#allocation5 + $0x7c8] sm:$0xff]
    %v315 = vld [vmem:[#allocation5 + $0x7d0] sm:$0xff]
    %v316 = vld [vmem:[#allocation5 + $0x7d8] sm:$0xff]
    %v317 = vld [vmem:[#allocation5 + $0x7e0] sm:$0xff]
    %v318 = vld [vmem:[#allocation5 + $0x7e8] sm:$0xff]
    %v319 = vld [vmem:[#allocation5 + $0x7f0] sm:$0xff]
    %v320 = vld [vmem:[#allocation5 + $0x7f8] sm:$0xff]
    %v321 = vld [vmem:[#allocation5 + $0x800] sm:$0xff]
    %v322 = vld [vmem:[#allocation5 + $0x808] sm:$0xff]
    %v323 = vld [vmem:[#allocation5 + $0x810] sm:$0xff]
    %v324 = vld [vmem:[#allocation5 + $0x818] sm:$0xff]
    %v325 = vld [vmem:[#allocation5 + $0x820] sm:$0xff]
    %v326 = vld [vmem:[#allocation5 + $0x828] sm:$0xff]
    %v327 = vld [vmem:[#allocation5 + $0x830] sm:$0xff]
    %v328 = vld [vmem:[#allocation5 + $0x838] sm:$0xff]
    %v329 = vld [vmem:[#allocation5 + $0x840] sm:$0xff]
    %v330 = vld [vmem:[#allocation5 + $0x848] sm:$0xff]
    %v331 = vld [vmem:[#allocation5 + $0x850] sm:$0xff]
    %v332 = vld [vmem:[#allocation5 + $0x858] sm:$0xff]
    %v333 = vld [vmem:[#allocation5 + $0x860] sm:$0xff]
    %v334 = vld [vmem:[#allocation5 + $0x868] sm:$0xff]
    %v335 = vld [vmem:[#allocation5 + $0x870] sm:$0xff]
    %v336 = vld [vmem:[#allocation5 + $0x878] sm:$0xff]
    %v337 = vld [vmem:[#allocation5 + $0x880] sm:$0xff]
    %v338 = vld [vmem:[#allocation5 + $0x888] sm:$0xff]
    %v339 = vld [vmem:[#allocation5 + $0x890] sm:$0xff]
    %v340 = vld [vmem:[#allocation5 + $0x898] sm:$0xff]
    %v341 = vld [vmem:[#allocation5 + $0x8a0] sm:$0xff]
    %v342 = vld [vmem:[#allocation5 + $0x8a8] sm:$0xff]
    %v343 = vld [vmem:[#allocation5 + $0x8b0] sm:$0xff]
    %v344 = vld [vmem:[#allocation5 + $0x8b8] sm:$0xff]
    %v345 = vld [vmem:[#allocation5 + $0x8c0] sm:$0xff]
    %v346 = vld [vmem:[#allocation5 + $0x8c8] sm:$0xff]
    %v347 = vld [vmem:[#allocation5 + $0x8d0] sm:$0xff]
    %v348 = vld [vmem:[#allocation5 + $0x8d8] sm:$0xff]
    %v349 = vld [vmem:[#allocation5 + $0x8e0] sm:$0xff]
    %v350 = vld [vmem:[#allocation5 + $0x8e8] sm:$0xff]
    %v351 = vld [vmem:[#allocation5 + $0x8f0] sm:$0xff]
    %v352 = vld [vmem:[#allocation5 + $0x8f8] sm:$0xff]
    %v353 = vld [vmem:[#allocation5 + $0x900] sm:$0xff]
    %v354 = vld [vmem:[#allocation5 + $0x908] sm:$0xff]
    %v355 = vld [vmem:[#allocation5 + $0x910] sm:$0xff]
    %v356 = vld [vmem:[#allocation5 + $0x918] sm:$0xff]
    %v357 = vld [vmem:[#allocation5 + $0x920] sm:$0xff]
    %v358 = vld [vmem:[#allocation5 + $0x928] sm:$0xff]
    %v359 = vld [vmem:[#allocation5 + $0x930] sm:$0xff]
    %v360 = vld [vmem:[#allocation5 + $0x938] sm:$0xff]
    %v361 = vld [vmem:[#allocation5 + $0x940] sm:$0xff]
    %v362 = vld [vmem:[#allocation5 + $0x948] sm:$0xff]
    %v363 = vld [vmem:[#allocation5 + $0x950] sm:$0xff]
    %v364 = vld [vmem:[#allocation5 + $0x958] sm:$0xff]
    %v365 = vld [vmem:[#allocation5 + $0x960] sm:$0xff]
    %v366 = vld [vmem:[#allocation5 + $0x968] sm:$0xff]
    %v367 = vld [vmem:[#allocation5 + $0x970] sm:$0xff]
    %v368 = vld [vmem:[#allocation5 + $0x978] sm:$0xff]
    %v369 = vld [vmem:[#allocation5 + $0x980] sm:$0xff]
    %v370 = vld [vmem:[#allocation5 + $0x988] sm:$0xff]
    %v371 = vld [vmem:[#allocation5 + $0x990] sm:$0xff]
    %v372 = vld [vmem:[#allocation5 + $0x998] sm:$0xff]
    %v373 = vld [vmem:[#allocation5 + $0x9a0] sm:$0xff]
    %v374 = vld [vmem:[#allocation5 + $0x9a8] sm:$0xff]
    %v375 = vld [vmem:[#allocation5 + $0x9b0] sm:$0xff]
    %v376 = vld [vmem:[#allocation5 + $0x9b8] sm:$0xff]
    %v377 = vld [vmem:[#allocation5 + $0x9c0] sm:$0xff]
    %v378 = vld [vmem:[#allocation5 + $0x9c8] sm:$0xff]
    %v379 = vld [vmem:[#allocation5 + $0x9d0] sm:$0xff]
    %v380 = vld [vmem:[#allocation5 + $0x9d8] sm:$0xff]
    %v381 = vld [vmem:[#allocation5 + $0x9e0] sm:$0xff]
    %v382 = vld [vmem:[#allocation5 + $0x9e8] sm:$0xff]
    %v383 = vld [vmem:[#allocation5 + $0x9f0] sm:$0xff]
    %v384 = vld [vmem:[#allocation5 + $0x9f8] sm:$0xff]
    %v385 = vld [vmem:[#allocation5 + $0xa00] sm:$0xff]
    %v386 = vld [vmem:[#allocation5 + $0xa08] sm:$0xff]
    %v387 = vld [vmem:[#allocation5 + $0xa10] sm:$0xff]
    %v388 = vld [vmem:[#allocation5 + $0xa18] sm:$0xff]
    %v389 = vld [vmem:[#allocation5 + $0xa20] sm:$0xff]
    %v390 = vld [vmem:[#allocation5 + $0xa28] sm:$0xff]
    %v391 = vld [vmem:[#allocation5 + $0xa30] sm:$0xff]
    %v392 = vld [vmem:[#allocation5 + $0xa38] sm:$0xff]
    %v393 = vld [vmem:[#allocation5 + $0xa40] sm:$0xff]
    %v394 = vld [vmem:[#allocation5 + $0xa48] sm:$0xff]
    %v395 = vld [vmem:[#allocation5 + $0xa50] sm:$0xff]
    %v396 = vld [vmem:[#allocation5 + $0xa58] sm:$0xff]
    %v397 = vld [vmem:[#allocation5 + $0xa60] sm:$0xff]
    %v398 = vld [vmem:[#allocation5 + $0xa68] sm:$0xff]
    %v399 = vld [vmem:[#allocation5 + $0xa70] sm:$0xff]
    %v400 = vld [vmem:[#allocation5 + $0xa78] sm:$0xff]
    %v401 = vld [vmem:[#allocation5 + $0xa80] sm:$0xff]
    %v402 = vld [vmem:[#allocation5 + $0xa88] sm:$0xff]
    %v403 = vld [vmem:[#allocation5 + $0xa90] sm:$0xff]
    %v404 = vld [vmem:[#allocation5 + $0xa98] sm:$0xff]
    %v405 = vld [vmem:[#allocation5 + $0xaa0] sm:$0xff]
    %v406 = vld [vmem:[#allocation5 + $0xaa8] sm:$0xff]
    %v407 = vld [vmem:[#allocation5 + $0xab0] sm:$0xff]
    %v408 = vld [vmem:[#allocation5 + $0xab8] sm:$0xff]
    %v409 = vld [vmem:[#allocation5 + $0xac0] sm:$0xff]
    %v410 = vld [vmem:[#allocation5 + $0xac8] sm:$0xff]
    %v411 = vld [vmem:[#allocation5 + $0xad0] sm:$0xff]
    %v412 = vld [vmem:[#allocation5 + $0xad8] sm:$0xff]
    %v413 = vld [vmem:[#allocation5 + $0xae0] sm:$0xff]
    %v414 = vld [vmem:[#allocation5 + $0xae8] sm:$0xff]
    %v415 = vld [vmem:[#allocation5 + $0xaf0] sm:$0xff]
    %v416 = vld [vmem:[#allocation5 + $0xaf8] sm:$0xff]
    %v417 = vld [vmem:[#allocation5 + $0xb00] sm:$0xff]
    %v418 = vld [vmem:[#allocation5 + $0xb08] sm:$0xff]
    %v419 = vld [vmem:[#allocation5 + $0xb10] sm:$0xff]
    %v420 = vld [vmem:[#allocation5 + $0xb18] sm:$0xff]
    %v421 = vld [vmem:[#allocation5 + $0xb20] sm:$0xff]
    %v422 = vld [vmem:[#allocation5 + $0xb28] sm:$0xff]
    %v423 = vld [vmem:[#allocation5 + $0xb30] sm:$0xff]
    %v424 = vld [vmem:[#allocation5 + $0xb38] sm:$0xff]
    %v425 = vld [vmem:[#allocation5 + $0xb40] sm:$0xff]
    %v426 = vld [vmem:[#allocation5 + $0xb48] sm:$0xff]
    %v427 = vld [vmem:[#allocation5 + $0xb50] sm:$0xff]
    %v428 = vld [vmem:[#allocation5 + $0xb58] sm:$0xff]
    %v429 = vld [vmem:[#allocation5 + $0xb60] sm:$0xff]
    %v430 = vld [vmem:[#allocation5 + $0xb68] sm:$0xff]
    %v431 = vld [vmem:[#allocation5 + $0xb70] sm:$0xff]
    %v432 = vld [vmem:[#allocation5 + $0xb78] sm:$0xff]
    %v433 = vld [vmem:[#allocation5 + $0xb80] sm:$0xff]
    %v434 = vld [vmem:[#allocation5 + $0xb88] sm:$0xff]
    %v435 = vld [vmem:[#allocation5 + $0xb90] sm:$0xff]
    %v436 = vld [vmem:[#allocation5 + $0xb98] sm:$0xff]
    %v437 = vld [vmem:[#allocation5 + $0xba0] sm:$0xff]
    %v438 = vld [vmem:[#allocation5 + $0xba8] sm:$0xff]
    %v439 = vld [vmem:[#allocation5 + $0xbb0] sm:$0xff]
    %v440 = vld [vmem:[#allocation5 + $0xbb8] sm:$0xff]
    %v441 = vld [vmem:[#allocation5 + $0xbc0] sm:$0xff]
    %v442 = vld [vmem:[#allocation5 + $0xbc8] sm:$0xff]
    %v443 = vld [vmem:[#allocation5 + $0xbd0] sm:$0xff]
    %v444 = vld [vmem:[#allocation5 + $0xbd8] sm:$0xff]
    %v445 = vld [vmem:[#allocation5 + $0xbe0] sm:$0xff]
    %v446 = vld [vmem:[#allocation5 + $0xbe8] sm:$0xff]
    %v447 = vld [vmem:[#allocation5 + $0xbf0] sm:$0xff]
    %v448 = vld [vmem:[#allocation5 + $0xbf8] sm:$0xff]
    %v449 = vld [vmem:[#allocation5 + $0xc00] sm:$0xff]
    %v450 = vld [vmem:[#allocation5 + $0xc08] sm:$0xff]
    %v451 = vld [vmem:[#allocation5 + $0xc10] sm:$0xff]
    %v452 = vld [vmem:[#allocation5 + $0xc18] sm:$0xff]
    %v453 = vld [vmem:[#allocation5 + $0xc20] sm:$0xff]
    %v454 = vld [vmem:[#allocation5 + $0xc28] sm:$0xff]
    %v455 = vld [vmem:[#allocation5 + $0xc30] sm:$0xff]
    %v456 = vld [vmem:[#allocation5 + $0xc38] sm:$0xff]
    %v465 = vunpack.c.l.b16 %v57
    %v466 = vunpack.c.h.b16 %v57
    %v467 = vunpack.c.l.b16 %v58
    %v468 = vunpack.c.h.b16 %v58
    %v469 = vunpack.c.l.b16 %v59
    %v470 = vunpack.c.h.b16 %v59
    %v471 = vunpack.c.l.b16 %v60
    %v472 = vunpack.c.l.b16 %v61
    %v473 = vunpack.c.h.b16 %v61
    %v474 = vunpack.c.l.b16 %v62
    %v475 = vunpack.c.h.b16 %v62
    %v476 = vunpack.c.l.b16 %v63
    %v477 = vunpack.c.h.b16 %v63
    %v478 = vunpack.c.l.b16 %v64
    %v479 = vpack.c.b16 %v472, %v465
    %v480 = vpack.c.b16 %v473, %v466
    %v481 = vpack.c.b16 %v474, %v467
    %v482 = vpack.c.b16 %v475, %v468
    %v483 = vpack.c.b16 %v476, %v469
    %v484 = vpack.c.b16 %v477, %v470
    %v485 = vpack.c.b16 %v478, %v471
    %v884 = vunpack.c.l.b16 %v65
    %v885 = vunpack.c.h.b16 %v65
    %v886 = vunpack.c.l.b16 %v66
    %v887 = vunpack.c.h.b16 %v66
    %v888 = vunpack.c.l.b16 %v67
    %v889 = vunpack.c.h.b16 %v67
    %v890 = vunpack.c.l.b16 %v68
    %v891 = vunpack.c.h.b16 %v68
    %v892 = vunpack.c.l.b16 %v69
    %v893 = vunpack.c.h.b16 %v69
    %v894 = vunpack.c.l.b16 %v70
    %v895 = vunpack.c.h.b16 %v70
    %v896 = vunpack.c.l.b16 %v71
    %v897 = vunpack.c.h.b16 %v71
    %v898 = vunpack.c.l.b16 %v72
    %v899 = vunpack.c.h.b16 %v72
    %v900 = vunpack.c.l.b16 %v73
    %v901 = vunpack.c.h.b16 %v73
    %v902 = vunpack.c.l.b16 %v74
    %v903 = vunpack.c.h.b16 %v74
    %v904 = vunpack.c.l.b16 %v75
    %v905 = vunpack.c.h.b16 %v75
    %v906 = vunpack.c.l.b16 %v76
    %v907 = vunpack.c.h.b16 %v76
    %v908 = vunpack.c.l.b16 %v77
    %v909 = vunpack.c.h.b16 %v77
    %v910 = vunpack.c.l.b16 %v78
    %v911 = vunpack.c.h.b16 %v78
    %v912 = vunpack.c.l.b16 %v79
    %v913 = vunpack.c.h.b16 %v79
    %v914 = vunpack.c.l.b16 %v80
    %v915 = vunpack.c.h.b16 %v80
    %v916 = vunpack.c.l.b16 %v81
    %v917 = vunpack.c.h.b16 %v81
    %v918 = vunpack.c.l.b16 %v82
    %v919 = vunpack.c.h.b16 %v82
    %v920 = vunpack.c.l.b16 %v83
    %v921 = vunpack.c.h.b16 %v83
    %v922 = vunpack.c.l.b16 %v84
    %v923 = vunpack.c.h.b16 %v84
    %v924 = vunpack.c.l.b16 %v85
    %v925 = vunpack.c.h.b16 %v85
    %v926 = vunpack.c.l.b16 %v86
    %v927 = vunpack.c.h.b16 %v86
    %v928 = vunpack.c.l.b16 %v87
    %v929 = vunpack.c.h.b16 %v87
    %v930 = vunpack.c.l.b16 %v88
    %v931 = vunpack.c.h.b16 %v88
    %v932 = vunpack.c.l.b16 %v89
    %v933 = vunpack.c.h.b16 %v89
    %v934 = vunpack.c.l.b16 %v90
    %v935 = vunpack.c.h.b16 %v90
    %v936 = vunpack.c.l.b16 %v91
    %v937 = vunpack.c.h.b16 %v91
    %v938 = vunpack.c.l.b16 %v92
    %v939 = vunpack.c.h.b16 %v92
    %v940 = vunpack.c.l.b16 %v93
    %v941 = vunpack.c.h.b16 %v93
    %v942 = vunpack.c.l.b16 %v94
    %v943 = vunpack.c.h.b16 %v94
    %v944 = vunpack.c.l.b16 %v95
    %v945 = vunpack.c.h.b16 %v95
    %v946 = vunpack.c.l.b16 %v96
    %v947 = vunpack.c.h.b16 %v96
    %v948 = vunpack.c.l.b16 %v97
    %v949 = vunpack.c.h.b16 %v97
    %v950 = vunpack.c.l.b16 %v98
    %v951 = vunpack.c.h.b16 %v98
    %v952 = vunpack.c.l.b16 %v99
    %v953 = vunpack.c.h.b16 %v99
    %v954 = vunpack.c.l.b16 %v100
    %v955 = vunpack.c.h.b16 %v100
    %v956 = vunpack.c.l.b16 %v101
    %v957 = vunpack.c.h.b16 %v101
    %v958 = vunpack.c.l.b16 %v102
    %v959 = vunpack.c.h.b16 %v102
    %v960 = vunpack.c.l.b16 %v103
    %v961 = vunpack.c.h.b16 %v103
    %v962 = vunpack.c.l.b16 %v104
    %v963 = vunpack.c.h.b16 %v104
    %v964 = vunpack.c.l.b16 %v105
    %v965 = vunpack.c.h.b16 %v105
    %v966 = vunpack.c.l.b16 %v106
    %v967 = vunpack.c.h.b16 %v106
    %v968 = vunpack.c.l.b16 %v107
    %v969 = vunpack.c.h.b16 %v107
    %v970 = vunpack.c.l.b16 %v108
    %v971 = vunpack.c.h.b16 %v108
    %v972 = vunpack.c.l.b16 %v109
    %v973 = vunpack.c.h.b16 %v109
    %v974 = vunpack.c.l.b16 %v110
    %v975 = vunpack.c.h.b16 %v110
    %v976 = vunpack.c.l.b16 %v111
    %v977 = vunpack.c.h.b16 %v111
    %v978 = vunpack.c.l.b16 %v112
    %v979 = vunpack.c.h.b16 %v112
    %v980 = vunpack.c.l.b16 %v113
    %v981 = vunpack.c.h.b16 %v113
    %v982 = vunpack.c.l.b16 %v114
    %v983 = vunpack.c.h.b16 %v114
    %v984 = vunpack.c.l.b16 %v115
    %v985 = vunpack.c.h.b16 %v115
    %v986 = vunpack.c.l.b16 %v116
    %v987 = vunpack.c.h.b16 %v116
    %v988 = vunpack.c.l.b16 %v117
    %v989 = vunpack.c.h.b16 %v117
    %v990 = vunpack.c.l.b16 %v118
    %v991 = vunpack.c.h.b16 %v118
    %v992 = vunpack.c.l.b16 %v119
    %v993 = vunpack.c.h.b16 %v119
    %v994 = vunpack.c.l.b16 %v120
    %v995 = vunpack.c.h.b16 %v120
    %v996 = vunpack.c.l.b16 %v121
    %v997 = vunpack.c.h.b16 %v121
    %v998 = vunpack.c.l.b16 %v122
    %v999 = vunpack.c.h.b16 %v122
    %v1000 = vunpack.c.l.b16 %v123
    %v1001 = vunpack.c.h.b16 %v123
    %v1002 = vunpack.c.l.b16 %v124
    %v1003 = vunpack.c.h.b16 %v124
    %v1004 = vunpack.c.l.b16 %v125
    %v1005 = vunpack.c.h.b16 %v125
    %v1006 = vunpack.c.l.b16 %v126
    %v1007 = vunpack.c.h.b16 %v126
    %v1008 = vunpack.c.l.b16 %v127
    %v1009 = vunpack.c.h.b16 %v127
    %v1010 = vunpack.c.l.b16 %v128
    %v1011 = vunpack.c.h.b16 %v128
    %v1012 = vunpack.c.l.b16 %v129
    %v1013 = vunpack.c.h.b16 %v129
    %v1014 = vunpack.c.l.b16 %v130
    %v1015 = vunpack.c.h.b16 %v130
    %v1016 = vunpack.c.l.b16 %v131
    %v1017 = vunpack.c.h.b16 %v131
    %v1018 = vunpack.c.l.b16 %v132
    %v1019 = vunpack.c.h.b16 %v132
    %v1020 = vunpack.c.l.b16 %v133
    %v1021 = vunpack.c.h.b16 %v133
    %v1022 = vunpack.c.l.b16 %v134
    %v1023 = vunpack.c.h.b16 %v134
    %v1024 = vunpack.c.l.b16 %v135
    %v1025 = vunpack.c.h.b16 %v135
    %v1026 = vunpack.c.l.b16 %v136
    %v1027 = vunpack.c.h.b16 %v136
    %v1028 = vunpack.c.l.b16 %v137
    %v1029 = vunpack.c.h.b16 %v137
    %v1030 = vunpack.c.l.b16 %v138
    %v1031 = vunpack.c.h.b16 %v138
    %v1032 = vunpack.c.l.b16 %v139
    %v1033 = vunpack.c.h.b16 %v139
    %v1034 = vunpack.c.l.b16 %v140
    %v1035 = vunpack.c.h.b16 %v140
    %v1036 = vunpack.c.l.b16 %v141
    %v1037 = vunpack.c.h.b16 %v141
    %v1038 = vunpack.c.l.b16 %v142
    %v1039 = vunpack.c.h.b16 %v142
    %v1040 = vunpack.c.l.b16 %v143
    %v1041 = vunpack.c.h.b16 %v143
    %v1042 = vunpack.c.l.b16 %v144
    %v1043 = vunpack.c.h.b16 %v144
    %v1044 = vunpack.c.l.b16 %v145
    %v1045 = vunpack.c.h.b16 %v145
    %v1046 = vunpack.c.l.b16 %v146
    %v1047 = vunpack.c.h.b16 %v146
    %v1048 = vunpack.c.l.b16 %v147
    %v1049 = vunpack.c.h.b16 %v147
    %v1050 = vunpack.c.l.b16 %v148
    %v1051 = vunpack.c.h.b16 %v148
    %v1052 = vunpack.c.l.b16 %v149
    %v1053 = vunpack.c.h.b16 %v149
    %v1054 = vunpack.c.l.b16 %v150
    %v1055 = vunpack.c.h.b16 %v150
    %v1056 = vunpack.c.l.b16 %v151
    %v1057 = vunpack.c.h.b16 %v151
    %v1058 = vunpack.c.l.b16 %v152
    %v1059 = vunpack.c.h.b16 %v152
    %v1060 = vunpack.c.l.b16 %v153
    %v1061 = vunpack.c.h.b16 %v153
    %v1062 = vunpack.c.l.b16 %v154
    %v1063 = vunpack.c.h.b16 %v154
    %v1064 = vunpack.c.l.b16 %v155
    %v1065 = vunpack.c.h.b16 %v155
    %v1066 = vunpack.c.l.b16 %v156
    %v1067 = vunpack.c.h.b16 %v156
    %v1068 = vunpack.c.l.b16 %v157
    %v1069 = vunpack.c.h.b16 %v157
    %v1070 = vunpack.c.l.b16 %v158
    %v1071 = vunpack.c.h.b16 %v158
    %v1072 = vunpack.c.l.b16 %v159
    %v1073 = vunpack.c.h.b16 %v159
    %v1074 = vunpack.c.l.b16 %v160
    %v1075 = vunpack.c.h.b16 %v160
    %v1076 = vunpack.c.l.b16 %v161
    %v1077 = vunpack.c.h.b16 %v161
    %v1078 = vunpack.c.l.b16 %v162
    %v1079 = vunpack.c.h.b16 %v162
    %v1080 = vunpack.c.l.b16 %v163
    %v1081 = vunpack.c.h.b16 %v163
    %v1082 = vunpack.c.l.b16 %v164
    %v1083 = vunpack.c.h.b16 %v164
    %v1084 = vunpack.c.l.b16 %v165
    %v1085 = vunpack.c.h.b16 %v165
    %v1086 = vunpack.c.l.b16 %v166
    %v1087 = vunpack.c.h.b16 %v166
    %v1088 = vunpack.c.l.b16 %v167
    %v1089 = vunpack.c.h.b16 %v167
    %v1090 = vunpack.c.l.b16 %v168
    %v1091 = vunpack.c.h.b16 %v168
    %v1092 = vunpack.c.l.b16 %v169
    %v1093 = vunpack.c.h.b16 %v169
    %v1094 = vunpack.c.l.b16 %v170
    %v1095 = vunpack.c.h.b16 %v170
    %v1096 = vunpack.c.l.b16 %v171
    %v1097 = vunpack.c.h.b16 %v171
    %v1098 = vunpack.c.l.b16 %v172
    %v1099 = vunpack.c.h.b16 %v172
    %v1100 = vunpack.c.l.b16 %v173
    %v1101 = vunpack.c.h.b16 %v173
    %v1102 = vunpack.c.l.b16 %v174
    %v1103 = vunpack.c.h.b16 %v174
    %v1104 = vunpack.c.l.b16 %v175
    %v1105 = vunpack.c.h.b16 %v175
    %v1106 = vunpack.c.l.b16 %v176
    %v1107 = vunpack.c.h.b16 %v176
    %v1108 = vunpack.c.l.b16 %v177
    %v1109 = vunpack.c.h.b16 %v177
    %v1110 = vunpack.c.l.b16 %v178
    %v1111 = vunpack.c.h.b16 %v178
    %v1112 = vunpack.c.l.b16 %v179
    %v1113 = vunpack.c.h.b16 %v179
    %v1114 = vunpack.c.l.b16 %v180
    %v1115 = vunpack.c.h.b16 %v180
    %v1116 = vunpack.c.l.b16 %v181
    %v1117 = vunpack.c.h.b16 %v181
    %v1118 = vunpack.c.l.b16 %v182
    %v1119 = vunpack.c.h.b16 %v182
    %v1120 = vunpack.c.l.b16 %v183
    %v1121 = vunpack.c.h.b16 %v183
    %v1122 = vunpack.c.l.b16 %v184
    %v1123 = vunpack.c.h.b16 %v184
    %v1124 = vunpack.c.l.b16 %v185
    %v1125 = vunpack.c.h.b16 %v185
    %v1126 = vunpack.c.l.b16 %v186
    %v1127 = vunpack.c.h.b16 %v186
    %v1128 = vunpack.c.l.b16 %v187
    %v1129 = vunpack.c.h.b16 %v187
    %v1130 = vunpack.c.l.b16 %v188
    %v1131 = vunpack.c.h.b16 %v188
    %v1132 = vunpack.c.l.b16 %v189
    %v1133 = vunpack.c.h.b16 %v189
    %v1134 = vunpack.c.l.b16 %v190
    %v1135 = vunpack.c.h.b16 %v190
    %v1136 = vunpack.c.l.b16 %v191
    %v1137 = vunpack.c.h.b16 %v191
    %v1138 = vunpack.c.l.b16 %v192
    %v1139 = vunpack.c.h.b16 %v192
    %v1140 = vunpack.c.l.b16 %v193
    %v1141 = vunpack.c.h.b16 %v193
    %v1142 = vunpack.c.l.b16 %v194
    %v1143 = vunpack.c.h.b16 %v194
    %v1144 = vunpack.c.l.b16 %v195
    %v1145 = vunpack.c.h.b16 %v195
    %v1146 = vunpack.c.l.b16 %v196
    %v1147 = vunpack.c.h.b16 %v196
    %v1148 = vunpack.c.l.b16 %v197
    %v1149 = vunpack.c.h.b16 %v197
    %v1150 = vunpack.c.l.b16 %v198
    %v1151 = vunpack.c.h.b16 %v198
    %v1152 = vunpack.c.l.b16 %v199
    %v1153 = vunpack.c.h.b16 %v199
    %v1154 = vunpack.c.l.b16 %v200
    %v1155 = vunpack.c.h.b16 %v200
    %v1156 = vunpack.c.l.b16 %v201
    %v1157 = vunpack.c.h.b16 %v201
    %v1158 = vunpack.c.l.b16 %v202
    %v1159 = vunpack.c.h.b16 %v202
    %v1160 = vunpack.c.l.b16 %v203
    %v1161 = vunpack.c.h.b16 %v203
    %v1162 = vunpack.c.l.b16 %v204
    %v1163 = vunpack.c.h.b16 %v204
    %v1164 = vunpack.c.l.b16 %v205
    %v1165 = vunpack.c.h.b16 %v205
    %v1166 = vunpack.c.l.b16 %v206
    %v1167 = vunpack.c.h.b16 %v206
    %v1168 = vunpack.c.l.b16 %v207
    %v1169 = vunpack.c.h.b16 %v207
    %v1170 = vunpack.c.l.b16 %v208
    %v1171 = vunpack.c.h.b16 %v208
    %v1172 = vunpack.c.l.b16 %v209
    %v1173 = vunpack.c.h.b16 %v209
    %v1174 = vunpack.c.l.b16 %v210
    %v1175 = vunpack.c.h.b16 %v210
    %v1176 = vunpack.c.l.b16 %v211
    %v1177 = vunpack.c.h.b16 %v211
    %v1178 = vunpack.c.l.b16 %v212
    %v1179 = vunpack.c.h.b16 %v212
    %v1180 = vunpack.c.l.b16 %v213
    %v1181 = vunpack.c.h.b16 %v213
    %v1182 = vunpack.c.l.b16 %v214
    %v1183 = vunpack.c.h.b16 %v214
    %v1184 = vunpack.c.l.b16 %v215
    %v1185 = vunpack.c.h.b16 %v215
    %v1186 = vunpack.c.l.b16 %v216
    %v1187 = vunpack.c.h.b16 %v216
    %v1188 = vunpack.c.l.b16 %v217
    %v1189 = vunpack.c.h.b16 %v217
    %v1190 = vunpack.c.l.b16 %v218
    %v1191 = vunpack.c.h.b16 %v218
    %v1192 = vunpack.c.l.b16 %v219
    %v1193 = vunpack.c.h.b16 %v219
    %v1194 = vunpack.c.l.b16 %v220
    %v1195 = vunpack.c.h.b16 %v220
    %v1196 = vunpack.c.l.b16 %v221
    %v1197 = vunpack.c.h.b16 %v221
    %v1198 = vunpack.c.l.b16 %v222
    %v1199 = vunpack.c.h.b16 %v222
    %v1200 = vunpack.c.l.b16 %v223
    %v1201 = vunpack.c.h.b16 %v223
    %v1202 = vunpack.c.l.b16 %v224
    %v1203 = vunpack.c.h.b16 %v224
    %v1204 = vunpack.c.l.b16 %v225
    %v1205 = vunpack.c.h.b16 %v225
    %v1206 = vunpack.c.l.b16 %v226
    %v1207 = vunpack.c.h.b16 %v226
    %v1208 = vunpack.c.l.b16 %v227
    %v1209 = vunpack.c.h.b16 %v227
    %v1210 = vunpack.c.l.b16 %v228
    %v1211 = vunpack.c.h.b16 %v228
    %v1212 = vunpack.c.l.b16 %v229
    %v1213 = vunpack.c.h.b16 %v229
    %v1214 = vunpack.c.l.b16 %v230
    %v1215 = vunpack.c.h.b16 %v230
    %v1216 = vunpack.c.l.b16 %v231
    %v1217 = vunpack.c.h.b16 %v231
    %v1218 = vunpack.c.l.b16 %v232
    %v1219 = vunpack.c.h.b16 %v232
    %v1220 = vunpack.c.l.b16 %v233
    %v1221 = vunpack.c.h.b16 %v233
    %v1222 = vunpack.c.l.b16 %v234
    %v1223 = vunpack.c.h.b16 %v234
    %v1224 = vunpack.c.l.b16 %v235
    %v1225 = vunpack.c.h.b16 %v235
    %v1226 = vunpack.c.l.b16 %v236
    %v1227 = vunpack.c.h.b16 %v236
    %v1228 = vunpack.c.l.b16 %v237
    %v1229 = vunpack.c.h.b16 %v237
    %v1230 = vunpack.c.l.b16 %v238
    %v1231 = vunpack.c.h.b16 %v238
    %v1232 = vunpack.c.l.b16 %v239
    %v1233 = vunpack.c.h.b16 %v239
    %v1234 = vunpack.c.l.b16 %v240
    %v1235 = vunpack.c.h.b16 %v240
    %v1236 = vunpack.c.l.b16 %v241
    %v1237 = vunpack.c.h.b16 %v241
    %v1238 = vunpack.c.l.b16 %v242
    %v1239 = vunpack.c.h.b16 %v242
    %v1240 = vunpack.c.l.b16 %v243
    %v1241 = vunpack.c.h.b16 %v243
    %v1242 = vunpack.c.l.b16 %v244
    %v1243 = vunpack.c.h.b16 %v244
    %v1244 = vunpack.c.l.b16 %v245
    %v1245 = vunpack.c.h.b16 %v245
    %v1246 = vunpack.c.l.b16 %v246
    %v1247 = vunpack.c.h.b16 %v246
    %v1248 = vunpack.c.l.b16 %v247
    %v1249 = vunpack.c.h.b16 %v247
    %v1250 = vunpack.c.l.b16 %v248
    %v1251 = vunpack.c.h.b16 %v248
    %v1252 = vunpack.c.l.b16 %v249
    %v1253 = vunpack.c.h.b16 %v249
    %v1254 = vunpack.c.l.b16 %v250
    %v1255 = vunpack.c.h.b16 %v250
    %v1256 = vunpack.c.l.b16 %v251
    %v1257 = vunpack.c.h.b16 %v251
    %v1258 = vunpack.c.l.b16 %v252
    %v1259 = vunpack.c.h.b16 %v252
    %v1260 = vunpack.c.l.b16 %v253
    %v1261 = vunpack.c.h.b16 %v253
    %v1262 = vunpack.c.l.b16 %v254
    %v1263 = vunpack.c.h.b16 %v254
    %v1264 = vunpack.c.l.b16 %v255
    %v1265 = vunpack.c.h.b16 %v255
    %v1266 = vunpack.c.l.b16 %v256
    %v1267 = vunpack.c.h.b16 %v256
    %v1268 = vunpack.c.l.b16 %v257
    %v1269 = vunpack.c.h.b16 %v257
    %v1270 = vunpack.c.l.b16 %v258
    %v1271 = vunpack.c.h.b16 %v258
    %v1272 = vunpack.c.l.b16 %v259
    %v1273 = vunpack.c.h.b16 %v259
    %v1274 = vunpack.c.l.b16 %v260
    %v1275 = vunpack.c.h.b16 %v260
    %v1276 = vunpack.c.l.b16 %v261
    %v1277 = vunpack.c.h.b16 %v261
    %v1278 = vunpack.c.l.b16 %v262
    %v1279 = vunpack.c.h.b16 %v262
    %v1280 = vunpack.c.l.b16 %v263
    %v1281 = vunpack.c.h.b16 %v263
    %v1282 = vunpack.c.l.b16 %v264
    %v1283 = vunpack.c.h.b16 %v264
    %v1284 = vunpack.c.l.b16 %v265
    %v1285 = vunpack.c.h.b16 %v265
    %v1286 = vunpack.c.l.b16 %v266
    %v1287 = vunpack.c.h.b16 %v266
    %v1288 = vunpack.c.l.b16 %v267
    %v1289 = vunpack.c.h.b16 %v267
    %v1290 = vunpack.c.l.b16 %v268
    %v1291 = vunpack.c.h.b16 %v268
    %v1292 = vunpack.c.l.b16 %v269
    %v1293 = vunpack.c.h.b16 %v269
    %v1294 = vunpack.c.l.b16 %v270
    %v1295 = vunpack.c.h.b16 %v270
    %v1296 = vunpack.c.l.b16 %v271
    %v1297 = vunpack.c.h.b16 %v271
    %v1298 = vunpack.c.l.b16 %v272
    %v1299 = vunpack.c.h.b16 %v272
    %v1300 = vunpack.c.l.b16 %v273
    %v1301 = vunpack.c.h.b16 %v273
    %v1302 = vunpack.c.l.b16 %v274
    %v1303 = vunpack.c.h.b16 %v274
    %v1304 = vunpack.c.l.b16 %v275
    %v1305 = vunpack.c.h.b16 %v275
    %v1306 = vunpack.c.l.b16 %v276
    %v1307 = vunpack.c.h.b16 %v276
    %v1308 = vunpack.c.l.b16 %v277
    %v1309 = vunpack.c.h.b16 %v277
    %v1310 = vunpack.c.l.b16 %v278
    %v1311 = vunpack.c.h.b16 %v278
    %v1312 = vunpack.c.l.b16 %v279
    %v1313 = vunpack.c.h.b16 %v279
    %v1314 = vunpack.c.l.b16 %v280
    %v1315 = vunpack.c.h.b16 %v280
    %v1316 = vunpack.c.l.b16 %v281
    %v1317 = vunpack.c.h.b16 %v281
    %v1318 = vunpack.c.l.b16 %v282
    %v1319 = vunpack.c.h.b16 %v282
    %v1320 = vunpack.c.l.b16 %v283
    %v1321 = vunpack.c.h.b16 %v283
    %v1322 = vunpack.c.l.b16 %v284
    %v1323 = vunpack.c.h.b16 %v284
    %v1324 = vunpack.c.l.b16 %v285
    %v1325 = vunpack.c.h.b16 %v285
    %v1326 = vunpack.c.l.b16 %v286
    %v1327 = vunpack.c.h.b16 %v286
    %v1328 = vunpack.c.l.b16 %v287
    %v1329 = vunpack.c.h.b16 %v287
    %v1330 = vunpack.c.l.b16 %v288
    %v1331 = vunpack.c.h.b16 %v288
    %v1332 = vunpack.c.l.b16 %v289
    %v1333 = vunpack.c.h.b16 %v289
    %v1334 = vunpack.c.l.b16 %v290
    %v1335 = vunpack.c.h.b16 %v290
    %v1336 = vunpack.c.l.b16 %v291
    %v1337 = vunpack.c.h.b16 %v291
    %v1338 = vunpack.c.l.b16 %v292
    %v1339 = vunpack.c.h.b16 %v292
    %v1340 = vunpack.c.l.b16 %v293
    %v1341 = vunpack.c.h.b16 %v293
    %v1342 = vunpack.c.l.b16 %v294
    %v1343 = vunpack.c.h.b16 %v294
    %v1344 = vunpack.c.l.b16 %v295
    %v1345 = vunpack.c.h.b16 %v295
    %v1346 = vunpack.c.l.b16 %v296
    %v1347 = vunpack.c.h.b16 %v296
    %v1348 = vunpack.c.l.b16 %v297
    %v1349 = vunpack.c.h.b16 %v297
    %v1350 = vunpack.c.l.b16 %v298
    %v1351 = vunpack.c.h.b16 %v298
    %v1352 = vunpack.c.l.b16 %v299
    %v1353 = vunpack.c.h.b16 %v299
    %v1354 = vunpack.c.l.b16 %v300
    %v1355 = vunpack.c.h.b16 %v300
    %v1356 = vunpack.c.l.b16 %v301
    %v1357 = vunpack.c.h.b16 %v301
    %v1358 = vunpack.c.l.b16 %v302
    %v1359 = vunpack.c.h.b16 %v302
    %v1360 = vunpack.c.l.b16 %v303
    %v1361 = vunpack.c.h.b16 %v303
    %v1362 = vunpack.c.l.b16 %v304
    %v1363 = vunpack.c.h.b16 %v304
    %v1364 = vunpack.c.l.b16 %v305
    %v1365 = vunpack.c.h.b16 %v305
    %v1366 = vunpack.c.l.b16 %v306
    %v1367 = vunpack.c.h.b16 %v306
    %v1368 = vunpack.c.l.b16 %v307
    %v1369 = vunpack.c.h.b16 %v307
    %v1370 = vunpack.c.l.b16 %v308
    %v1371 = vunpack.c.h.b16 %v308
    %v1372 = vunpack.c.l.b16 %v309
    %v1373 = vunpack.c.h.b16 %v309
    %v1374 = vunpack.c.l.b16 %v310
    %v1375 = vunpack.c.h.b16 %v310
    %v1376 = vunpack.c.l.b16 %v311
    %v1377 = vunpack.c.h.b16 %v311
    %v1378 = vunpack.c.l.b16 %v312
    %v1379 = vunpack.c.h.b16 %v312
    %v1380 = vunpack.c.l.b16 %v313
    %v1381 = vunpack.c.h.b16 %v313
    %v1382 = vunpack.c.l.b16 %v314
    %v1383 = vunpack.c.h.b16 %v314
    %v1384 = vunpack.c.l.b16 %v315
    %v1385 = vunpack.c.h.b16 %v315
    %v1386 = vunpack.c.l.b16 %v316
    %v1387 = vunpack.c.h.b16 %v316
    %v1388 = vunpack.c.l.b16 %v317
    %v1389 = vunpack.c.h.b16 %v317
    %v1390 = vunpack.c.l.b16 %v318
    %v1391 = vunpack.c.h.b16 %v318
    %v1392 = vunpack.c.l.b16 %v319
    %v1393 = vunpack.c.h.b16 %v319
    %v1394 = vunpack.c.l.b16 %v320
    %v1395 = vunpack.c.h.b16 %v320
    %v1396 = vunpack.c.l.b16 %v321
    %v1397 = vunpack.c.h.b16 %v321
    %v1398 = vunpack.c.l.b16 %v322
    %v1399 = vunpack.c.h.b16 %v322
    %v1400 = vunpack.c.l.b16 %v323
    %v1401 = vunpack.c.h.b16 %v323
    %v1402 = vunpack.c.l.b16 %v324
    %v1403 = vunpack.c.h.b16 %v324
    %v1404 = vunpack.c.l.b16 %v325
    %v1405 = vunpack.c.h.b16 %v325
    %v1406 = vunpack.c.l.b16 %v326
    %v1407 = vunpack.c.h.b16 %v326
    %v1408 = vunpack.c.l.b16 %v327
    %v1409 = vunpack.c.h.b16 %v327
    %v1410 = vunpack.c.l.b16 %v328
    %v1411 = vunpack.c.h.b16 %v328
    %v1412 = vunpack.c.l.b16 %v329
    %v1413 = vunpack.c.h.b16 %v329
    %v1414 = vunpack.c.l.b16 %v330
    %v1415 = vunpack.c.h.b16 %v330
    %v1416 = vunpack.c.l.b16 %v331
    %v1417 = vunpack.c.h.b16 %v331
    %v1418 = vunpack.c.l.b16 %v332
    %v1419 = vunpack.c.h.b16 %v332
    %v1420 = vunpack.c.l.b16 %v333
    %v1421 = vunpack.c.h.b16 %v333
    %v1422 = vunpack.c.l.b16 %v334
    %v1423 = vunpack.c.h.b16 %v334
    %v1424 = vunpack.c.l.b16 %v335
    %v1425 = vunpack.c.h.b16 %v335
    %v1426 = vunpack.c.l.b16 %v336
    %v1427 = vunpack.c.h.b16 %v336
    %v1428 = vunpack.c.l.b16 %v337
    %v1429 = vunpack.c.h.b16 %v337
    %v1430 = vunpack.c.l.b16 %v338
    %v1431 = vunpack.c.h.b16 %v338
    %v1432 = vunpack.c.l.b16 %v339
    %v1433 = vunpack.c.h.b16 %v339
    %v1434 = vunpack.c.l.b16 %v340
    %v1435 = vunpack.c.h.b16 %v340
    %v1436 = vunpack.c.l.b16 %v341
    %v1437 = vunpack.c.h.b16 %v341
    %v1438 = vunpack.c.l.b16 %v342
    %v1439 = vunpack.c.h.b16 %v342
    %v1440 = vunpack.c.l.b16 %v343
    %v1441 = vunpack.c.h.b16 %v343
    %v1442 = vunpack.c.l.b16 %v344
    %v1443 = vunpack.c.h.b16 %v344
    %v1444 = vunpack.c.l.b16 %v345
    %v1445 = vunpack.c.h.b16 %v345
    %v1446 = vunpack.c.l.b16 %v346
    %v1447 = vunpack.c.h.b16 %v346
    %v1448 = vunpack.c.l.b16 %v347
    %v1449 = vunpack.c.h.b16 %v347
    %v1450 = vunpack.c.l.b16 %v348
    %v1451 = vunpack.c.h.b16 %v348
    %v1452 = vunpack.c.l.b16 %v349
    %v1453 = vunpack.c.h.b16 %v349
    %v1454 = vunpack.c.l.b16 %v350
    %v1455 = vunpack.c.h.b16 %v350
    %v1456 = vunpack.c.l.b16 %v351
    %v1457 = vunpack.c.h.b16 %v351
    %v1458 = vunpack.c.l.b16 %v352
    %v1459 = vunpack.c.h.b16 %v352
    %v1460 = vunpack.c.l.b16 %v353
    %v1461 = vunpack.c.h.b16 %v353
    %v1462 = vunpack.c.l.b16 %v354
    %v1463 = vunpack.c.h.b16 %v354
    %v1464 = vunpack.c.l.b16 %v355
    %v1465 = vunpack.c.h.b16 %v355
    %v1466 = vunpack.c.l.b16 %v356
    %v1467 = vunpack.c.h.b16 %v356
    %v1468 = vunpack.c.l.b16 %v357
    %v1469 = vunpack.c.h.b16 %v357
    %v1470 = vunpack.c.l.b16 %v358
    %v1471 = vunpack.c.h.b16 %v358
    %v1472 = vunpack.c.l.b16 %v359
    %v1473 = vunpack.c.h.b16 %v359
    %v1474 = vunpack.c.l.b16 %v360
    %v1475 = vunpack.c.h.b16 %v360
    %v1476 = vunpack.c.l.b16 %v361
    %v1477 = vunpack.c.h.b16 %v361
    %v1478 = vunpack.c.l.b16 %v362
    %v1479 = vunpack.c.h.b16 %v362
    %v1480 = vunpack.c.l.b16 %v363
    %v1481 = vunpack.c.h.b16 %v363
    %v1482 = vunpack.c.l.b16 %v364
    %v1483 = vunpack.c.h.b16 %v364
    %v1484 = vunpack.c.l.b16 %v365
    %v1485 = vunpack.c.h.b16 %v365
    %v1486 = vunpack.c.l.b16 %v366
    %v1487 = vunpack.c.h.b16 %v366
    %v1488 = vunpack.c.l.b16 %v367
    %v1489 = vunpack.c.h.b16 %v367
    %v1490 = vunpack.c.l.b16 %v368
    %v1491 = vunpack.c.h.b16 %v368
    %v1492 = vunpack.c.l.b16 %v369
    %v1493 = vunpack.c.h.b16 %v369
    %v1494 = vunpack.c.l.b16 %v370
    %v1495 = vunpack.c.h.b16 %v370
    %v1496 = vunpack.c.l.b16 %v371
    %v1497 = vunpack.c.h.b16 %v371
    %v1498 = vunpack.c.l.b16 %v372
    %v1499 = vunpack.c.h.b16 %v372
    %v1500 = vunpack.c.l.b16 %v373
    %v1501 = vunpack.c.h.b16 %v373
    %v1502 = vunpack.c.l.b16 %v374
    %v1503 = vunpack.c.h.b16 %v374
    %v1504 = vunpack.c.l.b16 %v375
    %v1505 = vunpack.c.h.b16 %v375
    %v1506 = vunpack.c.l.b16 %v376
    %v1507 = vunpack.c.h.b16 %v376
    %v1508 = vunpack.c.l.b16 %v377
    %v1509 = vunpack.c.h.b16 %v377
    %v1510 = vunpack.c.l.b16 %v378
    %v1511 = vunpack.c.h.b16 %v378
    %v1512 = vunpack.c.l.b16 %v379
    %v1513 = vunpack.c.h.b16 %v379
    %v1514 = vunpack.c.l.b16 %v380
    %v1515 = vunpack.c.h.b16 %v380
    %v1516 = vunpack.c.l.b16 %v381
    %v1517 = vunpack.c.h.b16 %v381
    %v1518 = vunpack.c.l.b16 %v382
    %v1519 = vunpack.c.h.b16 %v382
    %v1520 = vunpack.c.l.b16 %v383
    %v1521 = vunpack.c.h.b16 %v383
    %v1522 = vunpack.c.l.b16 %v384
    %v1523 = vunpack.c.h.b16 %v384
    %v1524 = vunpack.c.l.b16 %v385
    %v1525 = vunpack.c.h.b16 %v385
    %v1526 = vunpack.c.l.b16 %v386
    %v1527 = vunpack.c.h.b16 %v386
    %v1528 = vunpack.c.l.b16 %v387
    %v1529 = vunpack.c.h.b16 %v387
    %v1530 = vunpack.c.l.b16 %v388
    %v1531 = vunpack.c.h.b16 %v388
    %v1532 = vunpack.c.l.b16 %v389
    %v1533 = vunpack.c.h.b16 %v389
    %v1534 = vunpack.c.l.b16 %v390
    %v1535 = vunpack.c.h.b16 %v390
    %v1536 = vunpack.c.l.b16 %v391
    %v1537 = vunpack.c.h.b16 %v391
    %v1538 = vunpack.c.l.b16 %v392
    %v1539 = vunpack.c.h.b16 %v392
    %v1540 = vunpack.c.l.b16 %v393
    %v1541 = vunpack.c.h.b16 %v393
    %v1542 = vunpack.c.l.b16 %v394
    %v1543 = vunpack.c.h.b16 %v394
    %v1544 = vunpack.c.l.b16 %v395
    %v1545 = vunpack.c.h.b16 %v395
    %v1546 = vunpack.c.l.b16 %v396
    %v1547 = vunpack.c.h.b16 %v396
    %v1548 = vunpack.c.l.b16 %v397
    %v1549 = vunpack.c.h.b16 %v397
    %v1550 = vunpack.c.l.b16 %v398
    %v1551 = vunpack.c.h.b16 %v398
    %v1552 = vunpack.c.l.b16 %v399
    %v1553 = vunpack.c.h.b16 %v399
    %v1554 = vunpack.c.l.b16 %v400
    %v1555 = vunpack.c.h.b16 %v400
    %v1556 = vunpack.c.l.b16 %v401
    %v1557 = vunpack.c.h.b16 %v401
    %v1558 = vunpack.c.l.b16 %v402
    %v1559 = vunpack.c.h.b16 %v402
    %v1560 = vunpack.c.l.b16 %v403
    %v1561 = vunpack.c.h.b16 %v403
    %v1562 = vunpack.c.l.b16 %v404
    %v1563 = vunpack.c.h.b16 %v404
    %v1564 = vunpack.c.l.b16 %v405
    %v1565 = vunpack.c.h.b16 %v405
    %v1566 = vunpack.c.l.b16 %v406
    %v1567 = vunpack.c.h.b16 %v406
    %v1568 = vunpack.c.l.b16 %v407
    %v1569 = vunpack.c.h.b16 %v407
    %v1570 = vunpack.c.l.b16 %v408
    %v1571 = vunpack.c.h.b16 %v408
    %v1572 = vunpack.c.l.b16 %v409
    %v1573 = vunpack.c.h.b16 %v409
    %v1574 = vunpack.c.l.b16 %v410
    %v1575 = vunpack.c.h.b16 %v410
    %v1576 = vunpack.c.l.b16 %v411
    %v1577 = vunpack.c.h.b16 %v411
    %v1578 = vunpack.c.l.b16 %v412
    %v1579 = vunpack.c.h.b16 %v412
    %v1580 = vunpack.c.l.b16 %v413
    %v1581 = vunpack.c.h.b16 %v413
    %v1582 = vunpack.c.l.b16 %v414
    %v1583 = vunpack.c.h.b16 %v414
    %v1584 = vunpack.c.l.b16 %v415
    %v1585 = vunpack.c.h.b16 %v415
    %v1586 = vunpack.c.l.b16 %v416
    %v1587 = vunpack.c.h.b16 %v416
    %v1588 = vunpack.c.l.b16 %v417
    %v1589 = vunpack.c.h.b16 %v417
    %v1590 = vunpack.c.l.b16 %v418
    %v1591 = vunpack.c.h.b16 %v418
    %v1592 = vunpack.c.l.b16 %v419
    %v1593 = vunpack.c.h.b16 %v419
    %v1594 = vunpack.c.l.b16 %v420
    %v1595 = vunpack.c.h.b16 %v420
    %v1596 = vunpack.c.l.b16 %v421
    %v1597 = vunpack.c.h.b16 %v421
    %v1598 = vunpack.c.l.b16 %v422
    %v1599 = vunpack.c.h.b16 %v422
    %v1600 = vunpack.c.l.b16 %v423
    %v1601 = vunpack.c.h.b16 %v423
    %v1602 = vunpack.c.l.b16 %v424
    %v1603 = vunpack.c.h.b16 %v424
    %v1604 = vunpack.c.l.b16 %v425
    %v1605 = vunpack.c.h.b16 %v425
    %v1606 = vunpack.c.l.b16 %v426
    %v1607 = vunpack.c.h.b16 %v426
    %v1608 = vunpack.c.l.b16 %v427
    %v1609 = vunpack.c.h.b16 %v427
    %v1610 = vunpack.c.l.b16 %v428
    %v1611 = vunpack.c.h.b16 %v428
    %v1612 = vunpack.c.l.b16 %v429
    %v1613 = vunpack.c.h.b16 %v429
    %v1614 = vunpack.c.l.b16 %v430
    %v1615 = vunpack.c.h.b16 %v430
    %v1616 = vunpack.c.l.b16 %v431
    %v1617 = vunpack.c.h.b16 %v431
    %v1618 = vunpack.c.l.b16 %v432
    %v1619 = vunpack.c.h.b16 %v432
    %v1620 = vunpack.c.l.b16 %v433
    %v1621 = vunpack.c.h.b16 %v433
    %v1622 = vunpack.c.l.b16 %v434
    %v1623 = vunpack.c.h.b16 %v434
    %v1624 = vunpack.c.l.b16 %v435
    %v1625 = vunpack.c.h.b16 %v435
    %v1626 = vunpack.c.l.b16 %v436
    %v1627 = vunpack.c.h.b16 %v436
    %v1628 = vunpack.c.l.b16 %v437
    %v1629 = vunpack.c.h.b16 %v437
    %v1630 = vunpack.c.l.b16 %v438
    %v1631 = vunpack.c.h.b16 %v438
    %v1632 = vunpack.c.l.b16 %v439
    %v1633 = vunpack.c.h.b16 %v439
    %v1634 = vunpack.c.l.b16 %v440
    %v1635 = vunpack.c.h.b16 %v440
    %v1636 = vunpack.c.l.b16 %v441
    %v1637 = vunpack.c.h.b16 %v441
    %v1638 = vunpack.c.l.b16 %v442
    %v1639 = vunpack.c.h.b16 %v442
    %v1640 = vunpack.c.l.b16 %v443
    %v1641 = vunpack.c.h.b16 %v443
    %v1642 = vunpack.c.l.b16 %v444
    %v1643 = vunpack.c.h.b16 %v444
    %v1644 = vunpack.c.l.b16 %v445
    %v1645 = vunpack.c.h.b16 %v445
    %v1646 = vunpack.c.l.b16 %v446
    %v1647 = vunpack.c.h.b16 %v446
    %v1648 = vunpack.c.l.b16 %v447
    %v1649 = vunpack.c.h.b16 %v447
    %v1650 = vunpack.c.l.b16 %v448
    %v1651 = vunpack.c.h.b16 %v448
    %v1652 = vunpack.c.l.b16 %v449
    %v1653 = vunpack.c.h.b16 %v449
    %v1654 = vunpack.c.l.b16 %v450
    %v1655 = vunpack.c.h.b16 %v450
    %v1656 = vunpack.c.l.b16 %v451
    %v1657 = vunpack.c.h.b16 %v451
    %v1658 = vunpack.c.l.b16 %v452
    %v1659 = vunpack.c.h.b16 %v452
    %v1660 = vunpack.c.l.b16 %v453
    %v1661 = vunpack.c.h.b16 %v453
    %v1662 = vunpack.c.l.b16 %v454
    %v1663 = vunpack.c.h.b16 %v454
    %v1664 = vunpack.c.l.b16 %v455
    %v1665 = vunpack.c.h.b16 %v455
    %v1666 = vunpack.c.l.b16 %v456
    %v1667 = vunpack.c.h.b16 %v456
    %v1668 = vpack.c.b16 %v892, %v884
    %v1669 = vpack.c.b16 %v893, %v885
    %v1670 = vpack.c.b16 %v894, %v886
    %v1671 = vpack.c.b16 %v895, %v887
    %v1672 = vpack.c.b16 %v896, %v888
    %v1673 = vpack.c.b16 %v897, %v889
    %v1674 = vpack.c.b16 %v898, %v890
    %v1675 = vpack.c.b16 %v899, %v891
    %v1676 = vpack.c.b16 %v908, %v900
    %v1677 = vpack.c.b16 %v909, %v901
    %v1678 = vpack.c.b16 %v910, %v902
    %v1679 = vpack.c.b16 %v911, %v903
    %v1680 = vpack.c.b16 %v912, %v904
    %v1681 = vpack.c.b16 %v913, %v905
    %v1682 = vpack.c.b16 %v914, %v906
    %v1683 = vpack.c.b16 %v915, %v907
    %v1684 = vpack.c.b16 %v924, %v916
    %v1685 = vpack.c.b16 %v925, %v917
    %v1686 = vpack.c.b16 %v926, %v918
    %v1687 = vpack.c.b16 %v927, %v919
    %v1688 = vpack.c.b16 %v928, %v920
    %v1689 = vpack.c.b16 %v929, %v921
    %v1690 = vpack.c.b16 %v930, %v922
    %v1691 = vpack.c.b16 %v931, %v923
    %v1692 = vpack.c.b16 %v940, %v932
    %v1693 = vpack.c.b16 %v941, %v933
    %v1694 = vpack.c.b16 %v942, %v934
    %v1695 = vpack.c.b16 %v943, %v935
    %v1696 = vpack.c.b16 %v944, %v936
    %v1697 = vpack.c.b16 %v945, %v937
    %v1698 = vpack.c.b16 %v946, %v938
    %v1699 = vpack.c.b16 %v947, %v939
    %v1700 = vpack.c.b16 %v956, %v948
    %v1701 = vpack.c.b16 %v957, %v949
    %v1702 = vpack.c.b16 %v958, %v950
    %v1703 = vpack.c.b16 %v959, %v951
    %v1704 = vpack.c.b16 %v960, %v952
    %v1705 = vpack.c.b16 %v961, %v953
    %v1706 = vpack.c.b16 %v962, %v954
    %v1707 = vpack.c.b16 %v963, %v955
    %v1708 = vpack.c.b16 %v972, %v964
    %v1709 = vpack.c.b16 %v973, %v965
    %v1710 = vpack.c.b16 %v974, %v966
    %v1711 = vpack.c.b16 %v975, %v967
    %v1712 = vpack.c.b16 %v976, %v968
    %v1713 = vpack.c.b16 %v977, %v969
    %v1714 = vpack.c.b16 %v978, %v970
    %v1715 = vpack.c.b16 %v979, %v971
    %v1716 = vpack.c.b16 %v988, %v980
    %v1717 = vpack.c.b16 %v989, %v981
    %v1718 = vpack.c.b16 %v990, %v982
    %v1719 = vpack.c.b16 %v991, %v983
    %v1720 = vpack.c.b16 %v992, %v984
    %v1721 = vpack.c.b16 %v993, %v985
    %v1722 = vpack.c.b16 %v994, %v986
    %v1723 = vpack.c.b16 %v995, %v987
    %v1724 = vpack.c.b16 %v1004, %v996
    %v1725 = vpack.c.b16 %v1005, %v997
    %v1726 = vpack.c.b16 %v1006, %v998
    %v1727 = vpack.c.b16 %v1007, %v999
    %v1728 = vpack.c.b16 %v1008, %v1000
    %v1729 = vpack.c.b16 %v1009, %v1001
    %v1730 = vpack.c.b16 %v1010, %v1002
    %v1731 = vpack.c.b16 %v1011, %v1003
    %v1732 = vpack.c.b16 %v1020, %v1012
    %v1733 = vpack.c.b16 %v1021, %v1013
    %v1734 = vpack.c.b16 %v1022, %v1014
    %v1735 = vpack.c.b16 %v1023, %v1015
    %v1736 = vpack.c.b16 %v1024, %v1016
    %v1737 = vpack.c.b16 %v1025, %v1017
    %v1738 = vpack.c.b16 %v1026, %v1018
    %v1739 = vpack.c.b16 %v1027, %v1019
    %v1740 = vpack.c.b16 %v1036, %v1028
    %v1741 = vpack.c.b16 %v1037, %v1029
    %v1742 = vpack.c.b16 %v1038, %v1030
    %v1743 = vpack.c.b16 %v1039, %v1031
    %v1744 = vpack.c.b16 %v1040, %v1032
    %v1745 = vpack.c.b16 %v1041, %v1033
    %v1746 = vpack.c.b16 %v1042, %v1034
    %v1747 = vpack.c.b16 %v1043, %v1035
    %v1748 = vpack.c.b16 %v1052, %v1044
    %v1749 = vpack.c.b16 %v1053, %v1045
    %v1750 = vpack.c.b16 %v1054, %v1046
    %v1751 = vpack.c.b16 %v1055, %v1047
    %v1752 = vpack.c.b16 %v1056, %v1048
    %v1753 = vpack.c.b16 %v1057, %v1049
    %v1754 = vpack.c.b16 %v1058, %v1050
    %v1755 = vpack.c.b16 %v1059, %v1051
    %v1756 = vpack.c.b16 %v1068, %v1060
    %v1757 = vpack.c.b16 %v1069, %v1061
    %v1758 = vpack.c.b16 %v1070, %v1062
    %v1759 = vpack.c.b16 %v1071, %v1063
    %v1760 = vpack.c.b16 %v1072, %v1064
    %v1761 = vpack.c.b16 %v1073, %v1065
    %v1762 = vpack.c.b16 %v1074, %v1066
    %v1763 = vpack.c.b16 %v1075, %v1067
    %v1764 = vpack.c.b16 %v1084, %v1076
    %v1765 = vpack.c.b16 %v1085, %v1077
    %v1766 = vpack.c.b16 %v1086, %v1078
    %v1767 = vpack.c.b16 %v1087, %v1079
    %v1768 = vpack.c.b16 %v1088, %v1080
    %v1769 = vpack.c.b16 %v1089, %v1081
    %v1770 = vpack.c.b16 %v1090, %v1082
    %v1771 = vpack.c.b16 %v1091, %v1083
    %v1772 = vpack.c.b16 %v1100, %v1092
    %v1773 = vpack.c.b16 %v1101, %v1093
    %v1774 = vpack.c.b16 %v1102, %v1094
    %v1775 = vpack.c.b16 %v1103, %v1095
    %v1776 = vpack.c.b16 %v1104, %v1096
    %v1777 = vpack.c.b16 %v1105, %v1097
    %v1778 = vpack.c.b16 %v1106, %v1098
    %v1779 = vpack.c.b16 %v1107, %v1099
    %v1780 = vpack.c.b16 %v1116, %v1108
    %v1781 = vpack.c.b16 %v1117, %v1109
    %v1782 = vpack.c.b16 %v1118, %v1110
    %v1783 = vpack.c.b16 %v1119, %v1111
    %v1784 = vpack.c.b16 %v1120, %v1112
    %v1785 = vpack.c.b16 %v1121, %v1113
    %v1786 = vpack.c.b16 %v1122, %v1114
    %v1787 = vpack.c.b16 %v1123, %v1115
    %v1788 = vpack.c.b16 %v1132, %v1124
    %v1789 = vpack.c.b16 %v1133, %v1125
    %v1790 = vpack.c.b16 %v1134, %v1126
    %v1791 = vpack.c.b16 %v1135, %v1127
    %v1792 = vpack.c.b16 %v1136, %v1128
    %v1793 = vpack.c.b16 %v1137, %v1129
    %v1794 = vpack.c.b16 %v1138, %v1130
    %v1795 = vpack.c.b16 %v1139, %v1131
    %v1796 = vpack.c.b16 %v1148, %v1140
    %v1797 = vpack.c.b16 %v1149, %v1141
    %v1798 = vpack.c.b16 %v1150, %v1142
    %v1799 = vpack.c.b16 %v1151, %v1143
    %v1800 = vpack.c.b16 %v1152, %v1144
    %v1801 = vpack.c.b16 %v1153, %v1145
    %v1802 = vpack.c.b16 %v1154, %v1146
    %v1803 = vpack.c.b16 %v1155, %v1147
    %v1804 = vpack.c.b16 %v1164, %v1156
    %v1805 = vpack.c.b16 %v1165, %v1157
    %v1806 = vpack.c.b16 %v1166, %v1158
    %v1807 = vpack.c.b16 %v1167, %v1159
    %v1808 = vpack.c.b16 %v1168, %v1160
    %v1809 = vpack.c.b16 %v1169, %v1161
    %v1810 = vpack.c.b16 %v1170, %v1162
    %v1811 = vpack.c.b16 %v1171, %v1163
    %v1812 = vpack.c.b16 %v1180, %v1172
    %v1813 = vpack.c.b16 %v1181, %v1173
    %v1814 = vpack.c.b16 %v1182, %v1174
    %v1815 = vpack.c.b16 %v1183, %v1175
    %v1816 = vpack.c.b16 %v1184, %v1176
    %v1817 = vpack.c.b16 %v1185, %v1177
    %v1818 = vpack.c.b16 %v1186, %v1178
    %v1819 = vpack.c.b16 %v1187, %v1179
    %v1820 = vpack.c.b16 %v1196, %v1188
    %v1821 = vpack.c.b16 %v1197, %v1189
    %v1822 = vpack.c.b16 %v1198, %v1190
    %v1823 = vpack.c.b16 %v1199, %v1191
    %v1824 = vpack.c.b16 %v1200, %v1192
    %v1825 = vpack.c.b16 %v1201, %v1193
    %v1826 = vpack.c.b16 %v1202, %v1194
    %v1827 = vpack.c.b16 %v1203, %v1195
    %v1828 = vpack.c.b16 %v1212, %v1204
    %v1829 = vpack.c.b16 %v1213, %v1205
    %v1830 = vpack.c.b16 %v1214, %v1206
    %v1831 = vpack.c.b16 %v1215, %v1207
    %v1832 = vpack.c.b16 %v1216, %v1208
    %v1833 = vpack.c.b16 %v1217, %v1209
    %v1834 = vpack.c.b16 %v1218, %v1210
    %v1835 = vpack.c.b16 %v1219, %v1211
    %v1836 = vpack.c.b16 %v1228, %v1220
    %v1837 = vpack.c.b16 %v1229, %v1221
    %v1838 = vpack.c.b16 %v1230, %v1222
    %v1839 = vpack.c.b16 %v1231, %v1223
    %v1840 = vpack.c.b16 %v1232, %v1224
    %v1841 = vpack.c.b16 %v1233, %v1225
    %v1842 = vpack.c.b16 %v1234, %v1226
    %v1843 = vpack.c.b16 %v1235, %v1227
    %v1844 = vpack.c.b16 %v1244, %v1236
    %v1845 = vpack.c.b16 %v1245, %v1237
    %v1846 = vpack.c.b16 %v1246, %v1238
    %v1847 = vpack.c.b16 %v1247, %v1239
    %v1848 = vpack.c.b16 %v1248, %v1240
    %v1849 = vpack.c.b16 %v1249, %v1241
    %v1850 = vpack.c.b16 %v1250, %v1242
    %v1851 = vpack.c.b16 %v1251, %v1243
    %v1852 = vpack.c.b16 %v1260, %v1252
    %v1853 = vpack.c.b16 %v1261, %v1253
    %v1854 = vpack.c.b16 %v1262, %v1254
    %v1855 = vpack.c.b16 %v1263, %v1255
    %v1856 = vpack.c.b16 %v1264, %v1256
    %v1857 = vpack.c.b16 %v1265, %v1257
    %v1858 = vpack.c.b16 %v1266, %v1258
    %v1859 = vpack.c.b16 %v1267, %v1259
    %v1860 = vpack.c.b16 %v1276, %v1268
    %v1861 = vpack.c.b16 %v1277, %v1269
    %v1862 = vpack.c.b16 %v1278, %v1270
    %v1863 = vpack.c.b16 %v1279, %v1271
    %v1864 = vpack.c.b16 %v1280, %v1272
    %v1865 = vpack.c.b16 %v1281, %v1273
    %v1866 = vpack.c.b16 %v1282, %v1274
    %v1867 = vpack.c.b16 %v1283, %v1275
    %v1868 = vpack.c.b16 %v1292, %v1284
    %v1869 = vpack.c.b16 %v1293, %v1285
    %v1870 = vpack.c.b16 %v1294, %v1286
    %v1871 = vpack.c.b16 %v1295, %v1287
    %v1872 = vpack.c.b16 %v1296, %v1288
    %v1873 = vpack.c.b16 %v1297, %v1289
    %v1874 = vpack.c.b16 %v1298, %v1290
    %v1875 = vpack.c.b16 %v1299, %v1291
    %v1876 = vpack.c.b16 %v1308, %v1300
    %v1877 = vpack.c.b16 %v1309, %v1301
    %v1878 = vpack.c.b16 %v1310, %v1302
    %v1879 = vpack.c.b16 %v1311, %v1303
    %v1880 = vpack.c.b16 %v1312, %v1304
    %v1881 = vpack.c.b16 %v1313, %v1305
    %v1882 = vpack.c.b16 %v1314, %v1306
    %v1883 = vpack.c.b16 %v1315, %v1307
    %v1884 = vpack.c.b16 %v1324, %v1316
    %v1885 = vpack.c.b16 %v1325, %v1317
    %v1886 = vpack.c.b16 %v1326, %v1318
    %v1887 = vpack.c.b16 %v1327, %v1319
    %v1888 = vpack.c.b16 %v1328, %v1320
    %v1889 = vpack.c.b16 %v1329, %v1321
    %v1890 = vpack.c.b16 %v1330, %v1322
    %v1891 = vpack.c.b16 %v1331, %v1323
    %v1892 = vpack.c.b16 %v1340, %v1332
    %v1893 = vpack.c.b16 %v1341, %v1333
    %v1894 = vpack.c.b16 %v1342, %v1334
    %v1895 = vpack.c.b16 %v1343, %v1335
    %v1896 = vpack.c.b16 %v1344, %v1336
    %v1897 = vpack.c.b16 %v1345, %v1337
    %v1898 = vpack.c.b16 %v1346, %v1338
    %v1899 = vpack.c.b16 %v1347, %v1339
    %v1900 = vpack.c.b16 %v1356, %v1348
    %v1901 = vpack.c.b16 %v1357, %v1349
    %v1902 = vpack.c.b16 %v1358, %v1350
    %v1903 = vpack.c.b16 %v1359, %v1351
    %v1904 = vpack.c.b16 %v1360, %v1352
    %v1905 = vpack.c.b16 %v1361, %v1353
    %v1906 = vpack.c.b16 %v1362, %v1354
    %v1907 = vpack.c.b16 %v1363, %v1355
    %v1908 = vpack.c.b16 %v1372, %v1364
    %v1909 = vpack.c.b16 %v1373, %v1365
    %v1910 = vpack.c.b16 %v1374, %v1366
    %v1911 = vpack.c.b16 %v1375, %v1367
    %v1912 = vpack.c.b16 %v1376, %v1368
    %v1913 = vpack.c.b16 %v1377, %v1369
    %v1914 = vpack.c.b16 %v1378, %v1370
    %v1915 = vpack.c.b16 %v1379, %v1371
    %v1916 = vpack.c.b16 %v1388, %v1380
    %v1917 = vpack.c.b16 %v1389, %v1381
    %v1918 = vpack.c.b16 %v1390, %v1382
    %v1919 = vpack.c.b16 %v1391, %v1383
    %v1920 = vpack.c.b16 %v1392, %v1384
    %v1921 = vpack.c.b16 %v1393, %v1385
    %v1922 = vpack.c.b16 %v1394, %v1386
    %v1923 = vpack.c.b16 %v1395, %v1387
    %v1924 = vpack.c.b16 %v1404, %v1396
    %v1925 = vpack.c.b16 %v1405, %v1397
    %v1926 = vpack.c.b16 %v1406, %v1398
    %v1927 = vpack.c.b16 %v1407, %v1399
    %v1928 = vpack.c.b16 %v1408, %v1400
    %v1929 = vpack.c.b16 %v1409, %v1401
    %v1930 = vpack.c.b16 %v1410, %v1402
    %v1931 = vpack.c.b16 %v1411, %v1403
    %v1932 = vpack.c.b16 %v1420, %v1412
    %v1933 = vpack.c.b16 %v1421, %v1413
    %v1934 = vpack.c.b16 %v1422, %v1414
    %v1935 = vpack.c.b16 %v1423, %v1415
    %v1936 = vpack.c.b16 %v1424, %v1416
    %v1937 = vpack.c.b16 %v1425, %v1417
    %v1938 = vpack.c.b16 %v1426, %v1418
    %v1939 = vpack.c.b16 %v1427, %v1419
    %v1940 = vpack.c.b16 %v1436, %v1428
    %v1941 = vpack.c.b16 %v1437, %v1429
    %v1942 = vpack.c.b16 %v1438, %v1430
    %v1943 = vpack.c.b16 %v1439, %v1431
    %v1944 = vpack.c.b16 %v1440, %v1432
    %v1945 = vpack.c.b16 %v1441, %v1433
    %v1946 = vpack.c.b16 %v1442, %v1434
    %v1947 = vpack.c.b16 %v1443, %v1435
    %v1948 = vpack.c.b16 %v1452, %v1444
    %v1949 = vpack.c.b16 %v1453, %v1445
    %v1950 = vpack.c.b16 %v1454, %v1446
    %v1951 = vpack.c.b16 %v1455, %v1447
    %v1952 = vpack.c.b16 %v1456, %v1448
    %v1953 = vpack.c.b16 %v1457, %v1449
    %v1954 = vpack.c.b16 %v1458, %v1450
    %v1955 = vpack.c.b16 %v1459, %v1451
    %v1956 = vpack.c.b16 %v1468, %v1460
    %v1957 = vpack.c.b16 %v1469, %v1461
    %v1958 = vpack.c.b16 %v1470, %v1462
    %v1959 = vpack.c.b16 %v1471, %v1463
    %v1960 = vpack.c.b16 %v1472, %v1464
    %v1961 = vpack.c.b16 %v1473, %v1465
    %v1962 = vpack.c.b16 %v1474, %v1466
    %v1963 = vpack.c.b16 %v1475, %v1467
    %v1964 = vpack.c.b16 %v1484, %v1476
    %v1965 = vpack.c.b16 %v1485, %v1477
    %v1966 = vpack.c.b16 %v1486, %v1478
    %v1967 = vpack.c.b16 %v1487, %v1479
    %v1968 = vpack.c.b16 %v1488, %v1480
    %v1969 = vpack.c.b16 %v1489, %v1481
    %v1970 = vpack.c.b16 %v1490, %v1482
    %v1971 = vpack.c.b16 %v1491, %v1483
    %v1972 = vpack.c.b16 %v1500, %v1492
    %v1973 = vpack.c.b16 %v1501, %v1493
    %v1974 = vpack.c.b16 %v1502, %v1494
    %v1975 = vpack.c.b16 %v1503, %v1495
    %v1976 = vpack.c.b16 %v1504, %v1496
    %v1977 = vpack.c.b16 %v1505, %v1497
    %v1978 = vpack.c.b16 %v1506, %v1498
    %v1979 = vpack.c.b16 %v1507, %v1499
    %v1980 = vpack.c.b16 %v1516, %v1508
    %v1981 = vpack.c.b16 %v1517, %v1509
    %v1982 = vpack.c.b16 %v1518, %v1510
    %v1983 = vpack.c.b16 %v1519, %v1511
    %v1984 = vpack.c.b16 %v1520, %v1512
    %v1985 = vpack.c.b16 %v1521, %v1513
    %v1986 = vpack.c.b16 %v1522, %v1514
    %v1987 = vpack.c.b16 %v1523, %v1515
    %v1988 = vpack.c.b16 %v1532, %v1524
    %v1989 = vpack.c.b16 %v1533, %v1525
    %v1990 = vpack.c.b16 %v1534, %v1526
    %v1991 = vpack.c.b16 %v1535, %v1527
    %v1992 = vpack.c.b16 %v1536, %v1528
    %v1993 = vpack.c.b16 %v1537, %v1529
    %v1994 = vpack.c.b16 %v1538, %v1530
    %v1995 = vpack.c.b16 %v1539, %v1531
    %v1996 = vpack.c.b16 %v1548, %v1540
    %v1997 = vpack.c.b16 %v1549, %v1541
    %v1998 = vpack.c.b16 %v1550, %v1542
    %v1999 = vpack.c.b16 %v1551, %v1543
    %v2000 = vpack.c.b16 %v1552, %v1544
    %v2001 = vpack.c.b16 %v1553, %v1545
    %v2002 = vpack.c.b16 %v1554, %v1546
    %v2003 = vpack.c.b16 %v1555, %v1547
    %v2004 = vpack.c.b16 %v1564, %v1556
    %v2005 = vpack.c.b16 %v1565, %v1557
    %v2006 = vpack.c.b16 %v1566, %v1558
    %v2007 = vpack.c.b16 %v1567, %v1559
    %v2008 = vpack.c.b16 %v1568, %v1560
    %v2009 = vpack.c.b16 %v1569, %v1561
    %v2010 = vpack.c.b16 %v1570, %v1562
    %v2011 = vpack.c.b16 %v1571, %v1563
    %v2012 = vpack.c.b16 %v1580, %v1572
    %v2013 = vpack.c.b16 %v1581, %v1573
    %v2014 = vpack.c.b16 %v1582, %v1574
    %v2015 = vpack.c.b16 %v1583, %v1575
    %v2016 = vpack.c.b16 %v1584, %v1576
    %v2017 = vpack.c.b16 %v1585, %v1577
    %v2018 = vpack.c.b16 %v1586, %v1578
    %v2019 = vpack.c.b16 %v1587, %v1579
    %v2020 = vpack.c.b16 %v1596, %v1588
    %v2021 = vpack.c.b16 %v1597, %v1589
    %v2022 = vpack.c.b16 %v1598, %v1590
    %v2023 = vpack.c.b16 %v1599, %v1591
    %v2024 = vpack.c.b16 %v1600, %v1592
    %v2025 = vpack.c.b16 %v1601, %v1593
    %v2026 = vpack.c.b16 %v1602, %v1594
    %v2027 = vpack.c.b16 %v1603, %v1595
    %v2028 = vpack.c.b16 %v1612, %v1604
    %v2029 = vpack.c.b16 %v1613, %v1605
    %v2030 = vpack.c.b16 %v1614, %v1606
    %v2031 = vpack.c.b16 %v1615, %v1607
    %v2032 = vpack.c.b16 %v1616, %v1608
    %v2033 = vpack.c.b16 %v1617, %v1609
    %v2034 = vpack.c.b16 %v1618, %v1610
    %v2035 = vpack.c.b16 %v1619, %v1611
    %v2036 = vpack.c.b16 %v1628, %v1620
    %v2037 = vpack.c.b16 %v1629, %v1621
    %v2038 = vpack.c.b16 %v1630, %v1622
    %v2039 = vpack.c.b16 %v1631, %v1623
    %v2040 = vpack.c.b16 %v1632, %v1624
    %v2041 = vpack.c.b16 %v1633, %v1625
    %v2042 = vpack.c.b16 %v1634, %v1626
    %v2043 = vpack.c.b16 %v1635, %v1627
    %v2044 = vpack.c.b16 %v1644, %v1636
    %v2045 = vpack.c.b16 %v1645, %v1637
    %v2046 = vpack.c.b16 %v1646, %v1638
    %v2047 = vpack.c.b16 %v1647, %v1639
    %v2048 = vpack.c.b16 %v1648, %v1640
    %v2049 = vpack.c.b16 %v1649, %v1641
    %v2050 = vpack.c.b16 %v1650, %v1642
    %v2051 = vpack.c.b16 %v1651, %v1643
    %v2052 = vpack.c.b16 %v1660, %v1652
    %v2053 = vpack.c.b16 %v1661, %v1653
    %v2054 = vpack.c.b16 %v1662, %v1654
    %v2055 = vpack.c.b16 %v1663, %v1655
    %v2056 = vpack.c.b16 %v1664, %v1656
    %v2057 = vpack.c.b16 %v1665, %v1657
    %v2058 = vpack.c.b16 %v1666, %v1658
    %v2059 = vpack.c.b16 %v1667, %v1659
    %vm2452 = vcmask 130048
    %v2454 = vsel %vm2452, %v485, 0
    %2456 = vmatprep.subr.bf16.mxu0 %v1669
    %2457 = vmatpush1.bf16.msra.mxu0 %v1668
    %2458 = vmatprep.subr.bf16.mxu0 %v1677
    %2459 = vmatpush1.bf16.msra.mxu0 %v1676
    %2460 = vmatprep.subr.bf16.mxu0 %v1685
    %2461 = vmatpush1.bf16.msra.mxu0 %v1684
    %2462 = vmatprep.subr.bf16.mxu0 %v1693
    %2463 = vmatpush1.bf16.msra.mxu0 %v1692
    %2464 = vmatprep.subr.bf16.mxu0 %v1701
    %2465 = vmatpush1.bf16.msra.mxu0 %v1700
    %2466 = vmatprep.subr.bf16.mxu0 %v1709
    %2467 = vmatpush1.bf16.msra.mxu0 %v1708
    %2468 = vmatprep.subr.bf16.mxu0 %v1717
    %2469 = vmatpush1.bf16.msra.mxu0 %v1716
    %2470 = vmatprep.subr.bf16.mxu0 %v1725
    %2471 = vmatpush1.bf16.msra.mxu0 %v1724
    %2472 = vmatprep.subr.bf16.mxu0 %v1733
    %2473 = vmatpush1.bf16.msra.mxu0 %v1732
    %2474 = vmatprep.subr.bf16.mxu0 %v1741
    %2475 = vmatpush1.bf16.msra.mxu0 %v1740
    %2476 = vmatprep.subr.bf16.mxu0 %v1749
    %2477 = vmatpush1.bf16.msra.mxu0 %v1748
    %2478 = vmatprep.subr.bf16.mxu0 %v1757
    %2479 = vmatpush1.bf16.msra.mxu0 %v1756
    %2480 = vmatprep.subr.bf16.mxu0 %v1765
    %2481 = vmatpush1.bf16.msra.mxu0 %v1764
    %2482 = vmatprep.subr.bf16.mxu0 %v1773
    %2483 = vmatpush1.bf16.msra.mxu0 %v1772
    %2484 = vmatprep.subr.bf16.mxu0 %v1781
    %2485 = vmatpush1.bf16.msra.mxu0 %v1780
    %2486 = vmatprep.subr.bf16.mxu0 %v1789
    %2487 = vmatpush1.bf16.msra.mxu0 %v1788
    %2488 = vmatprep.mubr.bf16.mxu0 %v480
    %2489 = vmatmul.mubr.bf16.gmra.mrb[0].mxu0 %v479
    %v2490 = vpop.f32.mrb[0].mxu0
    %v2491 = vadd.f32 0.0, %v2490
    %v2492 = vpop.f32.mrb[0].mxu0
    %v2493 = vadd.f32 0.0, %v2492
    %v2494 = vpop.f32.mrb[0].mxu0
    %v2495 = vadd.f32 0.0, %v2494
    %v2496 = vpop.f32.mrb[0].mxu0
    %v2497 = vadd.f32 0.0, %v2496
    %2498 = vdwg.mxu0
    %2499 = vmatprep.subr.bf16.mxu0 %v1797
    %2500 = vmatpush1.bf16.msra.mxu0 %v1796
    %2501 = vmatprep.subr.bf16.mxu0 %v1805
    %2502 = vmatpush1.bf16.msra.mxu0 %v1804
    %2503 = vmatprep.subr.bf16.mxu0 %v1813
    %2504 = vmatpush1.bf16.msra.mxu0 %v1812
    %2505 = vmatprep.subr.bf16.mxu0 %v1821
    %2506 = vmatpush1.bf16.msra.mxu0 %v1820
    %2507 = vmatprep.subr.bf16.mxu0 %v1829
    %2508 = vmatpush1.bf16.msra.mxu0 %v1828
    %2509 = vmatprep.subr.bf16.mxu0 %v1837
    %2510 = vmatpush1.bf16.msra.mxu0 %v1836
    %2511 = vmatprep.subr.bf16.mxu0 %v1845
    %2512 = vmatpush1.bf16.msra.mxu0 %v1844
    %2513 = vmatprep.subr.bf16.mxu0 %v1853
    %2514 = vmatpush1.bf16.msra.mxu0 %v1852
    %2515 = vmatprep.subr.bf16.mxu0 %v1861
    %2516 = vmatpush1.bf16.msra.mxu0 %v1860
    %2517 = vmatprep.subr.bf16.mxu0 %v1869
    %2518 = vmatpush1.bf16.msra.mxu0 %v1868
    %2519 = vmatprep.subr.bf16.mxu0 %v1877
    %2520 = vmatpush1.bf16.msra.mxu0 %v1876
    %2521 = vmatprep.subr.bf16.mxu0 %v1885
    %2522 = vmatpush1.bf16.msra.mxu0 %v1884
    %2523 = vmatprep.subr.bf16.mxu0 %v1893
    %2524 = vmatpush1.bf16.msra.mxu0 %v1892
    %2525 = vmatprep.subr.bf16.mxu0 %v1901
    %2526 = vmatpush1.bf16.msra.mxu0 %v1900
    %2527 = vmatprep.subr.bf16.mxu0 %v1909
    %2528 = vmatpush1.bf16.msra.mxu0 %v1908
    %2529 = vmatprep.subr.bf16.mxu0 %v1917
    %2530 = vmatpush1.bf16.msra.mxu0 %v1916
    %2531 = vmatprep.mubr.bf16.mxu0 %v482
    %2532 = vmatmul.mubr.bf16.gmra.mrb[0].mxu0 %v481
    %v2533 = vpop.f32.mrb[0].mxu0
    %v2534 = vadd.f32 %v2491, %v2533
    %v2535 = vpop.f32.mrb[0].mxu0
    %v2536 = vadd.f32 %v2493, %v2535
    %v2537 = vpop.f32.mrb[0].mxu0
    %v2538 = vadd.f32 %v2495, %v2537
    %v2539 = vpop.f32.mrb[0].mxu0
    %v2540 = vadd.f32 %v2497, %v2539
    %2541 = vdwg.mxu0
    %2542 = vmatprep.subr.bf16.mxu0 %v1925
    %2543 = vmatpush1.bf16.msra.mxu0 %v1924
    %2544 = vmatprep.subr.bf16.mxu0 %v1933
    %2545 = vmatpush1.bf16.msra.mxu0 %v1932
    %2546 = vmatprep.subr.bf16.mxu0 %v1941
    %2547 = vmatpush1.bf16.msra.mxu0 %v1940
    %2548 = vmatprep.subr.bf16.mxu0 %v1949
    %2549 = vmatpush1.bf16.msra.mxu0 %v1948
    %2550 = vmatprep.subr.bf16.mxu0 %v1957
    %2551 = vmatpush1.bf16.msra.mxu0 %v1956
    %2552 = vmatprep.subr.bf16.mxu0 %v1965
    %2553 = vmatpush1.bf16.msra.mxu0 %v1964
    %2554 = vmatprep.subr.bf16.mxu0 %v1973
    %2555 = vmatpush1.bf16.msra.mxu0 %v1972
    %2556 = vmatprep.subr.bf16.mxu0 %v1981
    %2557 = vmatpush1.bf16.msra.mxu0 %v1980
    %2558 = vmatprep.subr.bf16.mxu0 %v1989
    %2559 = vmatpush1.bf16.msra.mxu0 %v1988
    %2560 = vmatprep.subr.bf16.mxu0 %v1997
    %2561 = vmatpush1.bf16.msra.mxu0 %v1996
    %2562 = vmatprep.subr.bf16.mxu0 %v2005
    %2563 = vmatpush1.bf16.msra.mxu0 %v2004
    %2564 = vmatprep.subr.bf16.mxu0 %v2013
    %2565 = vmatpush1.bf16.msra.mxu0 %v2012
    %2566 = vmatprep.subr.bf16.mxu0 %v2021
    %2567 = vmatpush1.bf16.msra.mxu0 %v2020
    %2568 = vmatprep.subr.bf16.mxu0 %v2029
    %2569 = vmatpush1.bf16.msra.mxu0 %v2028
    %2570 = vmatprep.subr.bf16.mxu0 %v2037
    %2571 = vmatpush1.bf16.msra.mxu0 %v2036
    %2572 = vmatprep.subr.bf16.mxu0 %v2045
    %2573 = vmatpush1.bf16.msra.mxu0 %v2044
    %2574 = vmatprep.mubr.bf16.mxu0 %v484
    %2575 = vmatmul.mubr.bf16.gmra.mrb[0].mxu0 %v483
    %v2576 = vpop.f32.mrb[0].mxu0
    %v2577 = vadd.f32 %v2534, %v2576
    %v2578 = vpop.f32.mrb[0].mxu0
    %v2579 = vadd.f32 %v2536, %v2578
    %v2580 = vpop.f32.mrb[0].mxu0
    %v2581 = vadd.f32 %v2538, %v2580
    %v2582 = vpop.f32.mrb[0].mxu0
    %v2583 = vadd.f32 %v2540, %v2582
    %2584 = vdwg.mxu0
    %2585 = vmatprep.subr.bf16.mxu0 %v2053
    %2586 = vmatpush1.bf16.msra.mxu0 %v2052
    %2587 = vmatprep.subr.bf16.mxu0 0
    %2588 = vmatpush1.bf16.msra.mxu0 0
    %2589 = vmatprep.subr.bf16.mxu0 0
    %2590 = vmatpush1.bf16.msra.mxu0 0
    %2591 = vmatprep.subr.bf16.mxu0 0
    %2592 = vmatpush1.bf16.msra.mxu0 0
    %2593 = vmatprep.subr.bf16.mxu0 0
    %2594 = vmatpush1.bf16.msra.mxu0 0
    %2595 = vmatprep.subr.bf16.mxu0 0
    %2596 = vmatpush1.bf16.msra.mxu0 0
    %2597 = vmatprep.subr.bf16.mxu0 0
    %2598 = vmatpush1.bf16.msra.mxu0 0
    %2599 = vmatprep.subr.bf16.mxu0 0
    %2600 = vmatpush1.bf16.msra.mxu0 0
    %2601 = vmatprep.subr.bf16.mxu0 0
    %2602 = vmatpush1.bf16.msra.mxu0 0
    %2603 = vmatprep.subr.bf16.mxu0 0
    %2604 = vmatpush1.bf16.msra.mxu0 0
    %2605 = vmatprep.subr.bf16.mxu0 0
    %2606 = vmatpush1.bf16.msra.mxu0 0
    %2607 = vmatprep.subr.bf16.mxu0 0
    %2608 = vmatpush1.bf16.msra.mxu0 0
    %2609 = vmatprep.subr.bf16.mxu0 0
    %2610 = vmatpush1.bf16.msra.mxu0 0
    %2611 = vmatprep.subr.bf16.mxu0 0
    %2612 = vmatpush1.bf16.msra.mxu0 0
    %2613 = vmatprep.subr.bf16.mxu0 0
    %2614 = vmatpush1.bf16.msra.mxu0 0
    %2615 = vmatprep.subr.bf16.mxu0 0
    %2616 = vmatpush1.bf16.msra.mxu0 0
    %2617 = vmatprep.mubr.bf16.mxu0 0
    %2618 = vmatmul.mubr.bf16.gmra.mrb[0].mxu0 %v2454
    %v2619 = vpop.f32.mrb[0].mxu0
    %v2620 = vadd.f32 %v2577, %v2619
    %v2621 = vpop.f32.mrb[0].mxu0
    %v2622 = vadd.f32 %v2579, %v2621
    %v2623 = vpop.f32.mrb[0].mxu0
    %v2624 = vadd.f32 %v2581, %v2623
    %v2625 = vpop.f32.mrb[0].mxu0
    %v2626 = vadd.f32 %v2583, %v2625
    %2627 = vdwg.mxu0
    %2628 = vmatprep.subr.bf16.mxu0 %v1671
    %2629 = vmatpush1.bf16.msra.mxu0 %v1670
    %2630 = vmatprep.subr.bf16.mxu0 %v1679
    %2631 = vmatpush1.bf16.msra.mxu0 %v1678
    %2632 = vmatprep.subr.bf16.mxu0 %v1687
    %2633 = vmatpush1.bf16.msra.mxu0 %v1686
    %2634 = vmatprep.subr.bf16.mxu0 %v1695
    %2635 = vmatpush1.bf16.msra.mxu0 %v1694
    %2636 = vmatprep.subr.bf16.mxu0 %v1703
    %2637 = vmatpush1.bf16.msra.mxu0 %v1702
    %2638 = vmatprep.subr.bf16.mxu0 %v1711
    %2639 = vmatpush1.bf16.msra.mxu0 %v1710
    %2640 = vmatprep.subr.bf16.mxu0 %v1719
    %2641 = vmatpush1.bf16.msra.mxu0 %v1718
    %2642 = vmatprep.subr.bf16.mxu0 %v1727
    %2643 = vmatpush1.bf16.msra.mxu0 %v1726
    %2644 = vmatprep.subr.bf16.mxu0 %v1735
    %2645 = vmatpush1.bf16.msra.mxu0 %v1734
    %2646 = vmatprep.subr.bf16.mxu0 %v1743
    %2647 = vmatpush1.bf16.msra.mxu0 %v1742
    %2648 = vmatprep.subr.bf16.mxu0 %v1751
    %2649 = vmatpush1.bf16.msra.mxu0 %v1750
    %2650 = vmatprep.subr.bf16.mxu0 %v1759
    %2651 = vmatpush1.bf16.msra.mxu0 %v1758
    %2652 = vmatprep.subr.bf16.mxu0 %v1767
    %2653 = vmatpush1.bf16.msra.mxu0 %v1766
    %2654 = vmatprep.subr.bf16.mxu0 %v1775
    %2655 = vmatpush1.bf16.msra.mxu0 %v1774
    %2656 = vmatprep.subr.bf16.mxu0 %v1783
    %2657 = vmatpush1.bf16.msra.mxu0 %v1782
    %2658 = vmatprep.subr.bf16.mxu0 %v1791
    %2659 = vmatpush1.bf16.msra.mxu0 %v1790
    %2660 = vmatprep.mubr.bf16.mxu0 %v480
    %2661 = vmatmul.mubr.bf16.gmra.mrb[0].mxu0 %v479
    %v2662 = vpop.f32.mrb[0].mxu0
    %v2663 = vadd.f32 0.0, %v2662
    %v2664 = vpop.f32.mrb[0].mxu0
    %v2665 = vadd.f32 0.0, %v2664
    %v2666 = vpop.f32.mrb[0].mxu0
    %v2667 = vadd.f32 0.0, %v2666
    %v2668 = vpop.f32.mrb[0].mxu0
    %v2669 = vadd.f32 0.0, %v2668
    %2670 = vdwg.mxu0
    %2671 = vmatprep.subr.bf16.mxu0 %v1799
    %2672 = vmatpush1.bf16.msra.mxu0 %v1798
    %2673 = vmatprep.subr.bf16.mxu0 %v1807
    %2674 = vmatpush1.bf16.msra.mxu0 %v1806
    %2675 = vmatprep.subr.bf16.mxu0 %v1815
    %2676 = vmatpush1.bf16.msra.mxu0 %v1814
    %2677 = vmatprep.subr.bf16.mxu0 %v1823
    %2678 = vmatpush1.bf16.msra.mxu0 %v1822
    %2679 = vmatprep.subr.bf16.mxu0 %v1831
    %2680 = vmatpush1.bf16.msra.mxu0 %v1830
    %2681 = vmatprep.subr.bf16.mxu0 %v1839
    %2682 = vmatpush1.bf16.msra.mxu0 %v1838
    %2683 = vmatprep.subr.bf16.mxu0 %v1847
    %2684 = vmatpush1.bf16.msra.mxu0 %v1846
    %2685 = vmatprep.subr.bf16.mxu0 %v1855
    %2686 = vmatpush1.bf16.msra.mxu0 %v1854
    %2687 = vmatprep.subr.bf16.mxu0 %v1863
    %2688 = vmatpush1.bf16.msra.mxu0 %v1862
    %2689 = vmatprep.subr.bf16.mxu0 %v1871
    %2690 = vmatpush1.bf16.msra.mxu0 %v1870
    %2691 = vmatprep.subr.bf16.mxu0 %v1879
    %2692 = vmatpush1.bf16.msra.mxu0 %v1878
    %2693 = vmatprep.subr.bf16.mxu0 %v1887
    %2694 = vmatpush1.bf16.msra.mxu0 %v1886
    %2695 = vmatprep.subr.bf16.mxu0 %v1895
    %2696 = vmatpush1.bf16.msra.mxu0 %v1894
    %2697 = vmatprep.subr.bf16.mxu0 %v1903
    %2698 = vmatpush1.bf16.msra.mxu0 %v1902
    %2699 = vmatprep.subr.bf16.mxu0 %v1911
    %2700 = vmatpush1.bf16.msra.mxu0 %v1910
    %2701 = vmatprep.subr.bf16.mxu0 %v1919
    %2702 = vmatpush1.bf16.msra.mxu0 %v1918
    %2703 = vmatprep.mubr.bf16.mxu0 %v482
    %2704 = vmatmul.mubr.bf16.gmra.mrb[0].mxu0 %v481
    %v2705 = vpop.f32.mrb[0].mxu0
    %v2706 = vadd.f32 %v2663, %v2705
    %v2707 = vpop.f32.mrb[0].mxu0
    %v2708 = vadd.f32 %v2665, %v2707
    %v2709 = vpop.f32.mrb[0].mxu0
    %v2710 = vadd.f32 %v2667, %v2709
    %v2711 = vpop.f32.mrb[0].mxu0
    %v2712 = vadd.f32 %v2669, %v2711
    %2713 = vdwg.mxu0
    %2714 = vmatprep.subr.bf16.mxu0 %v1927
    %2715 = vmatpush1.bf16.msra.mxu0 %v1926
    %2716 = vmatprep.subr.bf16.mxu0 %v1935
    %2717 = vmatpush1.bf16.msra.mxu0 %v1934
    %2718 = vmatprep.subr.bf16.mxu0 %v1943
    %2719 = vmatpush1.bf16.msra.mxu0 %v1942
    %2720 = vmatprep.subr.bf16.mxu0 %v1951
    %2721 = vmatpush1.bf16.msra.mxu0 %v1950
    %2722 = vmatprep.subr.bf16.mxu0 %v1959
    %2723 = vmatpush1.bf16.msra.mxu0 %v1958
    %2724 = vmatprep.subr.bf16.mxu0 %v1967
    %2725 = vmatpush1.bf16.msra.mxu0 %v1966
    %2726 = vmatprep.subr.bf16.mxu0 %v1975
    %2727 = vmatpush1.bf16.msra.mxu0 %v1974
    %2728 = vmatprep.subr.bf16.mxu0 %v1983
    %2729 = vmatpush1.bf16.msra.mxu0 %v1982
    %2730 = vmatprep.subr.bf16.mxu0 %v1991
    %2731 = vmatpush1.bf16.msra.mxu0 %v1990
    %2732 = vmatprep.subr.bf16.mxu0 %v1999
    %2733 = vmatpush1.bf16.msra.mxu0 %v1998
    %2734 = vmatprep.subr.bf16.mxu0 %v2007
    %2735 = vmatpush1.bf16.msra.mxu0 %v2006
    %2736 = vmatprep.subr.bf16.mxu0 %v2015
    %2737 = vmatpush1.bf16.msra.mxu0 %v2014
    %2738 = vmatprep.subr.bf16.mxu0 %v2023
    %2739 = vmatpush1.bf16.msra.mxu0 %v2022
    %2740 = vmatprep.subr.bf16.mxu0 %v2031
    %2741 = vmatpush1.bf16.msra.mxu0 %v2030
    %2742 = vmatprep.subr.bf16.mxu0 %v2039
    %2743 = vmatpush1.bf16.msra.mxu0 %v2038
    %2744 = vmatprep.subr.bf16.mxu0 %v2047
    %2745 = vmatpush1.bf16.msra.mxu0 %v2046
    %2746 = vmatprep.mubr.bf16.mxu0 %v484
    %2747 = vmatmul.mubr.bf16.gmra.mrb[0].mxu0 %v483
    %v2748 = vpop.f32.mrb[0].mxu0
    %v2749 = vadd.f32 %v2706, %v2748
    %v2750 = vpop.f32.mrb[0].mxu0
    %v2751 = vadd.f32 %v2708, %v2750
    %v2752 = vpop.f32.mrb[0].mxu0
    %v2753 = vadd.f32 %v2710, %v2752
    %v2754 = vpop.f32.mrb[0].mxu0
    %v2755 = vadd.f32 %v2712, %v2754
    %2756 = vdwg.mxu0
    %2757 = vmatprep.subr.bf16.mxu0 %v2055
    %2758 = vmatpush1.bf16.msra.mxu0 %v2054
    %2759 = vmatprep.subr.bf16.mxu0 0
    %2760 = vmatpush1.bf16.msra.mxu0 0
    %2761 = vmatprep.subr.bf16.mxu0 0
    %2762 = vmatpush1.bf16.msra.mxu0 0
    %2763 = vmatprep.subr.bf16.mxu0 0
    %2764 = vmatpush1.bf16.msra.mxu0 0
    %2765 = vmatprep.subr.bf16.mxu0 0
    %2766 = vmatpush1.bf16.msra.mxu0 0
    %2767 = vmatprep.subr.bf16.mxu0 0
    %2768 = vmatpush1.bf16.msra.mxu0 0
    %2769 = vmatprep.subr.bf16.mxu0 0
    %2770 = vmatpush1.bf16.msra.mxu0 0
    %2771 = vmatprep.subr.bf16.mxu0 0
    %2772 = vmatpush1.bf16.msra.mxu0 0
    %2773 = vmatprep.subr.bf16.mxu0 0
    %2774 = vmatpush1.bf16.msra.mxu0 0
    %2775 = vmatprep.subr.bf16.mxu0 0
    %2776 = vmatpush1.bf16.msra.mxu0 0
    %2777 = vmatprep.subr.bf16.mxu0 0
    %2778 = vmatpush1.bf16.msra.mxu0 0
    %2779 = vmatprep.subr.bf16.mxu0 0
    %2780 = vmatpush1.bf16.msra.mxu0 0
    %2781 = vmatprep.subr.bf16.mxu0 0
    %2782 = vmatpush1.bf16.msra.mxu0 0
    %2783 = vmatprep.subr.bf16.mxu0 0
    %2784 = vmatpush1.bf16.msra.mxu0 0
    %2785 = vmatprep.subr.bf16.mxu0 0
    %2786 = vmatpush1.bf16.msra.mxu0 0
    %2787 = vmatprep.subr.bf16.mxu0 0
    %2788 = vmatpush1.bf16.msra.mxu0 0
    %2789 = vmatprep.mubr.bf16.mxu0 0
    %2790 = vmatmul.mubr.bf16.gmra.mrb[0].mxu0 %v2454
    %v2791 = vpop.f32.mrb[0].mxu0
    %v2792 = vadd.f32 %v2749, %v2791
    %v2793 = vpop.f32.mrb[0].mxu0
    %v2794 = vadd.f32 %v2751, %v2793
    %v2795 = vpop.f32.mrb[0].mxu0
    %v2796 = vadd.f32 %v2753, %v2795
    %v2797 = vpop.f32.mrb[0].mxu0
    %v2798 = vadd.f32 %v2755, %v2797
    %2799 = vdwg.mxu0
    %2800 = vmatprep.subr.bf16.mxu0 %v1673
    %2801 = vmatpush1.bf16.msra.mxu0 %v1672
    %2802 = vmatprep.subr.bf16.mxu0 %v1681
    %2803 = vmatpush1.bf16.msra.mxu0 %v1680
    %2804 = vmatprep.subr.bf16.mxu0 %v1689
    %2805 = vmatpush1.bf16.msra.mxu0 %v1688
    %2806 = vmatprep.subr.bf16.mxu0 %v1697
    %2807 = vmatpush1.bf16.msra.mxu0 %v1696
    %2808 = vmatprep.subr.bf16.mxu0 %v1705
    %2809 = vmatpush1.bf16.msra.mxu0 %v1704
    %2810 = vmatprep.subr.bf16.mxu0 %v1713
    %2811 = vmatpush1.bf16.msra.mxu0 %v1712
    %2812 = vmatprep.subr.bf16.mxu0 %v1721
    %2813 = vmatpush1.bf16.msra.mxu0 %v1720
    %2814 = vmatprep.subr.bf16.mxu0 %v1729
    %2815 = vmatpush1.bf16.msra.mxu0 %v1728
    %2816 = vmatprep.subr.bf16.mxu0 %v1737
    %2817 = vmatpush1.bf16.msra.mxu0 %v1736
    %2818 = vmatprep.subr.bf16.mxu0 %v1745
    %2819 = vmatpush1.bf16.msra.mxu0 %v1744
    %2820 = vmatprep.subr.bf16.mxu0 %v1753
    %2821 = vmatpush1.bf16.msra.mxu0 %v1752
    %2822 = vmatprep.subr.bf16.mxu0 %v1761
    %2823 = vmatpush1.bf16.msra.mxu0 %v1760
    %2824 = vmatprep.subr.bf16.mxu0 %v1769
    %2825 = vmatpush1.bf16.msra.mxu0 %v1768
    %2826 = vmatprep.subr.bf16.mxu0 %v1777
    %2827 = vmatpush1.bf16.msra.mxu0 %v1776
    %2828 = vmatprep.subr.bf16.mxu0 %v1785
    %2829 = vmatpush1.bf16.msra.mxu0 %v1784
    %2830 = vmatprep.subr.bf16.mxu0 %v1793
    %2831 = vmatpush1.bf16.msra.mxu0 %v1792
    %2832 = vmatprep.mubr.bf16.mxu0 %v480
    %2833 = vmatmul.mubr.bf16.gmra.mrb[0].mxu0 %v479
    %v2834 = vpop.f32.mrb[0].mxu0
    %v2835 = vadd.f32 0.0, %v2834
    %v2836 = vpop.f32.mrb[0].mxu0
    %v2837 = vadd.f32 0.0, %v2836
    %v2838 = vpop.f32.mrb[0].mxu0
    %v2839 = vadd.f32 0.0, %v2838
    %v2840 = vpop.f32.mrb[0].mxu0
    %v2841 = vadd.f32 0.0, %v2840
    %2842 = vdwg.mxu0
    %2843 = vmatprep.subr.bf16.mxu0 %v1801
    %2844 = vmatpush1.bf16.msra.mxu0 %v1800
    %2845 = vmatprep.subr.bf16.mxu0 %v1809
    %2846 = vmatpush1.bf16.msra.mxu0 %v1808
    %2847 = vmatprep.subr.bf16.mxu0 %v1817
    %2848 = vmatpush1.bf16.msra.mxu0 %v1816
    %2849 = vmatprep.subr.bf16.mxu0 %v1825
    %2850 = vmatpush1.bf16.msra.mxu0 %v1824
    %2851 = vmatprep.subr.bf16.mxu0 %v1833
    %2852 = vmatpush1.bf16.msra.mxu0 %v1832
    %2853 = vmatprep.subr.bf16.mxu0 %v1841
    %2854 = vmatpush1.bf16.msra.mxu0 %v1840
    %2855 = vmatprep.subr.bf16.mxu0 %v1849
    %2856 = vmatpush1.bf16.msra.mxu0 %v1848
    %2857 = vmatprep.subr.bf16.mxu0 %v1857
    %2858 = vmatpush1.bf16.msra.mxu0 %v1856
    %2859 = vmatprep.subr.bf16.mxu0 %v1865
    %2860 = vmatpush1.bf16.msra.mxu0 %v1864
    %2861 = vmatprep.subr.bf16.mxu0 %v1873
    %2862 = vmatpush1.bf16.msra.mxu0 %v1872
    %2863 = vmatprep.subr.bf16.mxu0 %v1881
    %2864 = vmatpush1.bf16.msra.mxu0 %v1880
    %2865 = vmatprep.subr.bf16.mxu0 %v1889
    %2866 = vmatpush1.bf16.msra.mxu0 %v1888
    %2867 = vmatprep.subr.bf16.mxu0 %v1897
    %2868 = vmatpush1.bf16.msra.mxu0 %v1896
    %2869 = vmatprep.subr.bf16.mxu0 %v1905
    %2870 = vmatpush1.bf16.msra.mxu0 %v1904
    %2871 = vmatprep.subr.bf16.mxu0 %v1913
    %2872 = vmatpush1.bf16.msra.mxu0 %v1912
    %2873 = vmatprep.subr.bf16.mxu0 %v1921
    %2874 = vmatpush1.bf16.msra.mxu0 %v1920
    %2875 = vmatprep.mubr.bf16.mxu0 %v482
    %2876 = vmatmul.mubr.bf16.gmra.mrb[0].mxu0 %v481
    %v2877 = vpop.f32.mrb[0].mxu0
    %v2878 = vadd.f32 %v2835, %v2877
    %v2879 = vpop.f32.mrb[0].mxu0
    %v2880 = vadd.f32 %v2837, %v2879
    %v2881 = vpop.f32.mrb[0].mxu0
    %v2882 = vadd.f32 %v2839, %v2881
    %v2883 = vpop.f32.mrb[0].mxu0
    %v2884 = vadd.f32 %v2841, %v2883
    %2885 = vdwg.mxu0
    %2886 = vmatprep.subr.bf16.mxu0 %v1929
    %2887 = vmatpush1.bf16.msra.mxu0 %v1928
    %2888 = vmatprep.subr.bf16.mxu0 %v1937
    %2889 = vmatpush1.bf16.msra.mxu0 %v1936
    %2890 = vmatprep.subr.bf16.mxu0 %v1945
    %2891 = vmatpush1.bf16.msra.mxu0 %v1944
    %2892 = vmatprep.subr.bf16.mxu0 %v1953
    %2893 = vmatpush1.bf16.msra.mxu0 %v1952
    %2894 = vmatprep.subr.bf16.mxu0 %v1961
    %2895 = vmatpush1.bf16.msra.mxu0 %v1960
    %2896 = vmatprep.subr.bf16.mxu0 %v1969
    %2897 = vmatpush1.bf16.msra.mxu0 %v1968
    %2898 = vmatprep.subr.bf16.mxu0 %v1977
    %2899 = vmatpush1.bf16.msra.mxu0 %v1976
    %2900 = vmatprep.subr.bf16.mxu0 %v1985
    %2901 = vmatpush1.bf16.msra.mxu0 %v1984
    %2902 = vmatprep.subr.bf16.mxu0 %v1993
    %2903 = vmatpush1.bf16.msra.mxu0 %v1992
    %2904 = vmatprep.subr.bf16.mxu0 %v2001
    %2905 = vmatpush1.bf16.msra.mxu0 %v2000
    %2906 = vmatprep.subr.bf16.mxu0 %v2009
    %2907 = vmatpush1.bf16.msra.mxu0 %v2008
    %2908 = vmatprep.subr.bf16.mxu0 %v2017
    %2909 = vmatpush1.bf16.msra.mxu0 %v2016
    %2910 = vmatprep.subr.bf16.mxu0 %v2025
    %2911 = vmatpush1.bf16.msra.mxu0 %v2024
    %2912 = vmatprep.subr.bf16.mxu0 %v2033
    %2913 = vmatpush1.bf16.msra.mxu0 %v2032
    %2914 = vmatprep.subr.bf16.mxu0 %v2041
    %2915 = vmatpush1.bf16.msra.mxu0 %v2040
    %2916 = vmatprep.subr.bf16.mxu0 %v2049
    %2917 = vmatpush1.bf16.msra.mxu0 %v2048
    %2918 = vmatprep.mubr.bf16.mxu0 %v484
    %2919 = vmatmul.mubr.bf16.gmra.mrb[0].mxu0 %v483
    %v2920 = vpop.f32.mrb[0].mxu0
    %v2921 = vadd.f32 %v2878, %v2920
    %v2922 = vpop.f32.mrb[0].mxu0
    %v2923 = vadd.f32 %v2880, %v2922
    %v2924 = vpop.f32.mrb[0].mxu0
    %v2925 = vadd.f32 %v2882, %v2924
    %v2926 = vpop.f32.mrb[0].mxu0
    %v2927 = vadd.f32 %v2884, %v2926
    %2928 = vdwg.mxu0
    %2929 = vmatprep.subr.bf16.mxu0 %v2057
    %2930 = vmatpush1.bf16.msra.mxu0 %v2056
    %2931 = vmatprep.subr.bf16.mxu0 0
    %2932 = vmatpush1.bf16.msra.mxu0 0
    %2933 = vmatprep.subr.bf16.mxu0 0
    %2934 = vmatpush1.bf16.msra.mxu0 0
    %2935 = vmatprep.subr.bf16.mxu0 0
    %2936 = vmatpush1.bf16.msra.mxu0 0
    %2937 = vmatprep.subr.bf16.mxu0 0
    %2938 = vmatpush1.bf16.msra.mxu0 0
    %2939 = vmatprep.subr.bf16.mxu0 0
    %2940 = vmatpush1.bf16.msra.mxu0 0
    %2941 = vmatprep.subr.bf16.mxu0 0
    %2942 = vmatpush1.bf16.msra.mxu0 0
    %2943 = vmatprep.subr.bf16.mxu0 0
    %2944 = vmatpush1.bf16.msra.mxu0 0
    %2945 = vmatprep.subr.bf16.mxu0 0
    %2946 = vmatpush1.bf16.msra.mxu0 0
    %2947 = vmatprep.subr.bf16.mxu0 0
    %2948 = vmatpush1.bf16.msra.mxu0 0
    %2949 = vmatprep.subr.bf16.mxu0 0
    %2950 = vmatpush1.bf16.msra.mxu0 0
    %2951 = vmatprep.subr.bf16.mxu0 0
    %2952 = vmatpush1.bf16.msra.mxu0 0
    %2953 = vmatprep.subr.bf16.mxu0 0
    %2954 = vmatpush1.bf16.msra.mxu0 0
    %2955 = vmatprep.subr.bf16.mxu0 0
    %2956 = vmatpush1.bf16.msra.mxu0 0
    %2957 = vmatprep.subr.bf16.mxu0 0
    %2958 = vmatpush1.bf16.msra.mxu0 0
    %2959 = vmatprep.subr.bf16.mxu0 0
    %2960 = vmatpush1.bf16.msra.mxu0 0
    %2961 = vmatprep.mubr.bf16.mxu0 0
    %2962 = vmatmul.mubr.bf16.gmra.mrb[0].mxu0 %v2454
    %v2963 = vpop.f32.mrb[0].mxu0
    %v2964 = vadd.f32 %v2921, %v2963
    %v2965 = vpop.f32.mrb[0].mxu0
    %v2966 = vadd.f32 %v2923, %v2965
    %v2967 = vpop.f32.mrb[0].mxu0
    %v2968 = vadd.f32 %v2925, %v2967
    %v2969 = vpop.f32.mrb[0].mxu0
    %v2970 = vadd.f32 %v2927, %v2969
    %2971 = vdwg.mxu0
    %2972 = vmatprep.subr.bf16.mxu0 %v1675
    %2973 = vmatpush1.bf16.msra.mxu0 %v1674
    %2974 = vmatprep.subr.bf16.mxu0 %v1683
    %2975 = vmatpush1.bf16.msra.mxu0 %v1682
    %2976 = vmatprep.subr.bf16.mxu0 %v1691
    %2977 = vmatpush1.bf16.msra.mxu0 %v1690
    %2978 = vmatprep.subr.bf16.mxu0 %v1699
    %2979 = vmatpush1.bf16.msra.mxu0 %v1698
    %2980 = vmatprep.subr.bf16.mxu0 %v1707
    %2981 = vmatpush1.bf16.msra.mxu0 %v1706
    %2982 = vmatprep.subr.bf16.mxu0 %v1715
    %2983 = vmatpush1.bf16.msra.mxu0 %v1714
    %2984 = vmatprep.subr.bf16.mxu0 %v1723
    %2985 = vmatpush1.bf16.msra.mxu0 %v1722
    %2986 = vmatprep.subr.bf16.mxu0 %v1731
    %2987 = vmatpush1.bf16.msra.mxu0 %v1730
    %2988 = vmatprep.subr.bf16.mxu0 %v1739
    %2989 = vmatpush1.bf16.msra.mxu0 %v1738
    %2990 = vmatprep.subr.bf16.mxu0 %v1747
    %2991 = vmatpush1.bf16.msra.mxu0 %v1746
    %2992 = vmatprep.subr.bf16.mxu0 %v1755
    %2993 = vmatpush1.bf16.msra.mxu0 %v1754
    %2994 = vmatprep.subr.bf16.mxu0 %v1763
    %2995 = vmatpush1.bf16.msra.mxu0 %v1762
    %2996 = vmatprep.subr.bf16.mxu0 %v1771
    %2997 = vmatpush1.bf16.msra.mxu0 %v1770
    %2998 = vmatprep.subr.bf16.mxu0 %v1779
    %2999 = vmatpush1.bf16.msra.mxu0 %v1778
    %3000 = vmatprep.subr.bf16.mxu0 %v1787
    %3001 = vmatpush1.bf16.msra.mxu0 %v1786
    %3002 = vmatprep.subr.bf16.mxu0 %v1795
    %3003 = vmatpush1.bf16.msra.mxu0 %v1794
    %3004 = vmatprep.mubr.bf16.mxu0 %v480
    %3005 = vmatmul.mubr.bf16.gmra.mrb[0].mxu0 %v479
    %v3006 = vpop.f32.mrb[0].mxu0
    %v3007 = vadd.f32 0.0, %v3006
    %v3008 = vpop.f32.mrb[0].mxu0
    %v3009 = vadd.f32 0.0, %v3008
    %v3010 = vpop.f32.mrb[0].mxu0
    %v3011 = vadd.f32 0.0, %v3010
    %v3012 = vpop.f32.mrb[0].mxu0
    %v3013 = vadd.f32 0.0, %v3012
    %3014 = vdwg.mxu0
    %3015 = vmatprep.subr.bf16.mxu0 %v1803
    %3016 = vmatpush1.bf16.msra.mxu0 %v1802
    %3017 = vmatprep.subr.bf16.mxu0 %v1811
    %3018 = vmatpush1.bf16.msra.mxu0 %v1810
    %3019 = vmatprep.subr.bf16.mxu0 %v1819
    %3020 = vmatpush1.bf16.msra.mxu0 %v1818
    %3021 = vmatprep.subr.bf16.mxu0 %v1827
    %3022 = vmatpush1.bf16.msra.mxu0 %v1826
    %3023 = vmatprep.subr.bf16.mxu0 %v1835
    %3024 = vmatpush1.bf16.msra.mxu0 %v1834
    %3025 = vmatprep.subr.bf16.mxu0 %v1843
    %3026 = vmatpush1.bf16.msra.mxu0 %v1842
    %3027 = vmatprep.subr.bf16.mxu0 %v1851
    %3028 = vmatpush1.bf16.msra.mxu0 %v1850
    %3029 = vmatprep.subr.bf16.mxu0 %v1859
    %3030 = vmatpush1.bf16.msra.mxu0 %v1858
    %3031 = vmatprep.subr.bf16.mxu0 %v1867
    %3032 = vmatpush1.bf16.msra.mxu0 %v1866
    %3033 = vmatprep.subr.bf16.mxu0 %v1875
    %3034 = vmatpush1.bf16.msra.mxu0 %v1874
    %3035 = vmatprep.subr.bf16.mxu0 %v1883
    %3036 = vmatpush1.bf16.msra.mxu0 %v1882
    %3037 = vmatprep.subr.bf16.mxu0 %v1891
    %3038 = vmatpush1.bf16.msra.mxu0 %v1890
    %3039 = vmatprep.subr.bf16.mxu0 %v1899
    %3040 = vmatpush1.bf16.msra.mxu0 %v1898
    %3041 = vmatprep.subr.bf16.mxu0 %v1907
    %3042 = vmatpush1.bf16.msra.mxu0 %v1906
    %3043 = vmatprep.subr.bf16.mxu0 %v1915
    %3044 = vmatpush1.bf16.msra.mxu0 %v1914
    %3045 = vmatprep.subr.bf16.mxu0 %v1923
    %3046 = vmatpush1.bf16.msra.mxu0 %v1922
    %3047 = vmatprep.mubr.bf16.mxu0 %v482
    %3048 = vmatmul.mubr.bf16.gmra.mrb[0].mxu0 %v481
    %v3049 = vpop.f32.mrb[0].mxu0
    %v3050 = vadd.f32 %v3007, %v3049
    %v3051 = vpop.f32.mrb[0].mxu0
    %v3052 = vadd.f32 %v3009, %v3051
    %v3053 = vpop.f32.mrb[0].mxu0
    %v3054 = vadd.f32 %v3011, %v3053
    %v3055 = vpop.f32.mrb[0].mxu0
    %v3056 = vadd.f32 %v3013, %v3055
    %3057 = vdwg.mxu0
    %3058 = vmatprep.subr.bf16.mxu0 %v1931
    %3059 = vmatpush1.bf16.msra.mxu0 %v1930
    %3060 = vmatprep.subr.bf16.mxu0 %v1939
    %3061 = vmatpush1.bf16.msra.mxu0 %v1938
    %3062 = vmatprep.subr.bf16.mxu0 %v1947
    %3063 = vmatpush1.bf16.msra.mxu0 %v1946
    %3064 = vmatprep.subr.bf16.mxu0 %v1955
    %3065 = vmatpush1.bf16.msra.mxu0 %v1954
    %3066 = vmatprep.subr.bf16.mxu0 %v1963
    %3067 = vmatpush1.bf16.msra.mxu0 %v1962
    %3068 = vmatprep.subr.bf16.mxu0 %v1971
    %3069 = vmatpush1.bf16.msra.mxu0 %v1970
    %3070 = vmatprep.subr.bf16.mxu0 %v1979
    %3071 = vmatpush1.bf16.msra.mxu0 %v1978
    %3072 = vmatprep.subr.bf16.mxu0 %v1987
    %3073 = vmatpush1.bf16.msra.mxu0 %v1986
    %3074 = vmatprep.subr.bf16.mxu0 %v1995
    %3075 = vmatpush1.bf16.msra.mxu0 %v1994
    %3076 = vmatprep.subr.bf16.mxu0 %v2003
    %3077 = vmatpush1.bf16.msra.mxu0 %v2002
    %3078 = vmatprep.subr.bf16.mxu0 %v2011
    %3079 = vmatpush1.bf16.msra.mxu0 %v2010
    %3080 = vmatprep.subr.bf16.mxu0 %v2019
    %3081 = vmatpush1.bf16.msra.mxu0 %v2018
    %3082 = vmatprep.subr.bf16.mxu0 %v2027
    %3083 = vmatpush1.bf16.msra.mxu0 %v2026
    %3084 = vmatprep.subr.bf16.mxu0 %v2035
    %3085 = vmatpush1.bf16.msra.mxu0 %v2034
    %3086 = vmatprep.subr.bf16.mxu0 %v2043
    %3087 = vmatpush1.bf16.msra.mxu0 %v2042
    %3088 = vmatprep.subr.bf16.mxu0 %v2051
    %3089 = vmatpush1.bf16.msra.mxu0 %v2050
    %3090 = vmatprep.mubr.bf16.mxu0 %v484
    %3091 = vmatmul.mubr.bf16.gmra.mrb[0].mxu0 %v483
    %v3092 = vpop.f32.mrb[0].mxu0
    %v3093 = vadd.f32 %v3050, %v3092
    %v3094 = vpop.f32.mrb[0].mxu0
    %v3095 = vadd.f32 %v3052, %v3094
    %v3096 = vpop.f32.mrb[0].mxu0
    %v3097 = vadd.f32 %v3054, %v3096
    %v3098 = vpop.f32.mrb[0].mxu0
    %v3099 = vadd.f32 %v3056, %v3098
    %3100 = vdwg.mxu0
    %3101 = vmatprep.subr.bf16.mxu0 %v2059
    %3102 = vmatpush1.bf16.msra.mxu0 %v2058
    %3103 = vmatprep.subr.bf16.mxu0 0
    %3104 = vmatpush1.bf16.msra.mxu0 0
    %3105 = vmatprep.subr.bf16.mxu0 0
    %3106 = vmatpush1.bf16.msra.mxu0 0
    %3107 = vmatprep.subr.bf16.mxu0 0
    %3108 = vmatpush1.bf16.msra.mxu0 0
    %3109 = vmatprep.subr.bf16.mxu0 0
    %3110 = vmatpush1.bf16.msra.mxu0 0
    %3111 = vmatprep.subr.bf16.mxu0 0
    %3112 = vmatpush1.bf16.msra.mxu0 0
    %3113 = vmatprep.subr.bf16.mxu0 0
    %3114 = vmatpush1.bf16.msra.mxu0 0
    %3115 = vmatprep.subr.bf16.mxu0 0
    %3116 = vmatpush1.bf16.msra.mxu0 0
    %3117 = vmatprep.subr.bf16.mxu0 0
    %3118 = vmatpush1.bf16.msra.mxu0 0
    %3119 = vmatprep.subr.bf16.mxu0 0
    %3120 = vmatpush1.bf16.msra.mxu0 0
    %3121 = vmatprep.subr.bf16.mxu0 0
    %3122 = vmatpush1.bf16.msra.mxu0 0
    %3123 = vmatprep.subr.bf16.mxu0 0
    %3124 = vmatpush1.bf16.msra.mxu0 0
    %3125 = vmatprep.subr.bf16.mxu0 0
    %3126 = vmatpush1.bf16.msra.mxu0 0
    %3127 = vmatprep.subr.bf16.mxu0 0
    %3128 = vmatpush1.bf16.msra.mxu0 0
    %3129 = vmatprep.subr.bf16.mxu0 0
    %3130 = vmatpush1.bf16.msra.mxu0 0
    %3131 = vmatprep.subr.bf16.mxu0 0
    %3132 = vmatpush1.bf16.msra.mxu0 0
    %3133 = vmatprep.mubr.bf16.mxu0 0
    %3134 = vmatmul.mubr.bf16.gmra.mrb[0].mxu0 %v2454
    %v3135 = vpop.f32.mrb[0].mxu0
    %v3136 = vadd.f32 %v3093, %v3135
    %v3137 = vpop.f32.mrb[0].mxu0
    %v3138 = vadd.f32 %v3095, %v3137
    %v3139 = vpop.f32.mrb[0].mxu0
    %v3140 = vadd.f32 %v3097, %v3139
    %v3141 = vpop.f32.mrb[0].mxu0
    %v3142 = vadd.f32 %v3099, %v3141
    %3143 = vdwg.mxu0
    %v3144 = vmax.f32 %v2620, 0.0
    %v3145 = vmax.f32 %v2622, 0.0
    %v3146 = vmax.f32 %v2792, 0.0
    %v3147 = vmax.f32 %v2794, 0.0
    %v3148 = vmax.f32 %v2964, 0.0
    %v3149 = vmax.f32 %v2966, 0.0
    %v3150 = vmax.f32 %v3136, 0.0
    %v3151 = vmax.f32 %v3138, 0.0
    %v3152 = vmax.f32 %v2624, 0.0
    %v3153 = vmax.f32 %v2626, 0.0
    %v3154 = vmax.f32 %v2796, 0.0
    %v3155 = vmax.f32 %v2798, 0.0
    %v3156 = vmax.f32 %v2968, 0.0
    %v3157 = vmax.f32 %v2970, 0.0
    %v3158 = vmax.f32 %v3140, 0.0
    %v3159 = vmax.f32 %v3142, 0.0
    %v3160 = vpack.c.bf16 %v3152, %v3144
    %v3161 = vpack.c.bf16 %v3153, %v3145
    %v3162 = vpack.c.bf16 %v3154, %v3146
    %v3163 = vpack.c.bf16 %v3155, %v3147
    %v3164 = vpack.c.bf16 %v3156, %v3148
    %v3165 = vpack.c.bf16 %v3157, %v3149
    %v3166 = vpack.c.bf16 %v3158, %v3150
    %v3167 = vpack.c.bf16 %v3159, %v3151
    %v3168 = vld [vmem:[#allocation7] sm:$0xf]
    %v3169 = vld [vmem:[#allocation7 + $0x4] sm:$0xf]
    %v3170 = vld [vmem:[#allocation7 + $0x8] sm:$0xf]
    %v3171 = vld [vmem:[#allocation7 + $0xc] sm:$0xf]
    %v3172 = vld [vmem:[#allocation7 + $0x10] sm:$0xf]
    %v3173 = vld [vmem:[#allocation7 + $0x14] sm:$0xf]
    %v3174 = vld [vmem:[#allocation7 + $0x18] sm:$0xf]
    %v3175 = vld [vmem:[#allocation7 + $0x1c] sm:$0xf]
    %v3176 = vld [vmem:[#allocation7 + $0x20] sm:$0xf]
    %v3177 = vld [vmem:[#allocation7 + $0x24] sm:$0xf]
    %v3178 = vld [vmem:[#allocation7 + $0x28] sm:$0xf]
    %v3179 = vld [vmem:[#allocation7 + $0x2c] sm:$0xf]
    %v3180 = vld [vmem:[#allocation7 + $0x30] sm:$0xf]
    %v3181 = vld [vmem:[#allocation7 + $0x34] sm:$0xf]
    %v3182 = vld [vmem:[#allocation7 + $0x38] sm:$0xf]
    %v3183 = vld [vmem:[#allocation7 + $0x3c] sm:$0xf]
    %v3184 = vld [vmem:[#allocation7 + $0x40] sm:$0xf]
    %v3185 = vld [vmem:[#allocation7 + $0x44] sm:$0xf]
    %v3186 = vld [vmem:[#allocation7 + $0x48] sm:$0xf]
    %v3187 = vld [vmem:[#allocation7 + $0x4c] sm:$0xf]
    %v3188 = vld [vmem:[#allocation7 + $0x50] sm:$0xf]
    %v3189 = vld [vmem:[#allocation7 + $0x54] sm:$0xf]
    %v3190 = vld [vmem:[#allocation7 + $0x58] sm:$0xf]
    %v3191 = vld [vmem:[#allocation7 + $0x5c] sm:$0xf]
    %v3192 = vld [vmem:[#allocation7 + $0x60] sm:$0xf]
    %v3193 = vld [vmem:[#allocation7 + $0x64] sm:$0xf]
    %v3194 = vld [vmem:[#allocation7 + $0x68] sm:$0xf]
    %v3195 = vld [vmem:[#allocation7 + $0x6c] sm:$0xf]
    %v3196 = vld [vmem:[#allocation7 + $0x70] sm:$0xf]
    %v3197 = vld [vmem:[#allocation7 + $0x74] sm:$0xf]
    %v3198 = vld [vmem:[#allocation7 + $0x78] sm:$0xf]
    %v3199 = vld [vmem:[#allocation7 + $0x7c] sm:$0xf]
    %v3200 = vld [vmem:[#allocation7 + $0x80] sm:$0xf]
    %v3201 = vld [vmem:[#allocation7 + $0x84] sm:$0xf]
    %v3202 = vld [vmem:[#allocation7 + $0x88] sm:$0xf]
    %v3203 = vld [vmem:[#allocation7 + $0x8c] sm:$0xf]
    %v3204 = vld [vmem:[#allocation7 + $0x90] sm:$0xf]
    %v3205 = vld [vmem:[#allocation7 + $0x94] sm:$0xf]
    %v3206 = vld [vmem:[#allocation7 + $0x98] sm:$0xf]
    %v3207 = vld [vmem:[#allocation7 + $0x9c] sm:$0xf]
    %v3208 = vld [vmem:[#allocation7 + $0xa0] sm:$0xf]
    %v3209 = vld [vmem:[#allocation7 + $0xa4] sm:$0xf]
    %v3210 = vld [vmem:[#allocation7 + $0xa8] sm:$0xf]
    %v3211 = vld [vmem:[#allocation7 + $0xac] sm:$0xf]
    %v3212 = vld [vmem:[#allocation7 + $0xb0] sm:$0xf]
    %v3213 = vld [vmem:[#allocation7 + $0xb4] sm:$0xf]
    %v3214 = vld [vmem:[#allocation7 + $0xb8] sm:$0xf]
    %v3215 = vld [vmem:[#allocation7 + $0xbc] sm:$0xf]
    %v3216 = vld [vmem:[#allocation7 + $0xc0] sm:$0xf]
    %v3217 = vld [vmem:[#allocation7 + $0xc4] sm:$0xf]
    %v3218 = vld [vmem:[#allocation7 + $0xc8] sm:$0xf]
    %v3219 = vld [vmem:[#allocation7 + $0xcc] sm:$0xf]
    %v3220 = vld [vmem:[#allocation7 + $0xd0] sm:$0xf]
    %v3221 = vld [vmem:[#allocation7 + $0xd4] sm:$0xf]
    %v3222 = vld [vmem:[#allocation7 + $0xd8] sm:$0xf]
    %v3223 = vld [vmem:[#allocation7 + $0xdc] sm:$0xf]
    %v3224 = vld [vmem:[#allocation7 + $0xe0] sm:$0xf]
    %v3225 = vld [vmem:[#allocation7 + $0xe4] sm:$0xf]
    %v3226 = vld [vmem:[#allocation7 + $0xe8] sm:$0xf]
    %v3227 = vld [vmem:[#allocation7 + $0xec] sm:$0xf]
    %v3228 = vld [vmem:[#allocation7 + $0xf0] sm:$0xf]
    %v3229 = vld [vmem:[#allocation7 + $0xf4] sm:$0xf]
    %v3230 = vld [vmem:[#allocation7 + $0xf8] sm:$0xf]
    %v3231 = vld [vmem:[#allocation7 + $0xfc] sm:$0xf]
    %v3232 = vld [vmem:[#allocation7 + $0x100] sm:$0xf]
    %v3233 = vld [vmem:[#allocation7 + $0x104] sm:$0xf]
    %v3234 = vld [vmem:[#allocation7 + $0x108] sm:$0xf]
    %v3235 = vld [vmem:[#allocation7 + $0x10c] sm:$0xf]
    %v3236 = vld [vmem:[#allocation7 + $0x110] sm:$0xf]
    %v3237 = vld [vmem:[#allocation7 + $0x114] sm:$0xf]
    %v3238 = vld [vmem:[#allocation7 + $0x118] sm:$0xf]
    %v3239 = vld [vmem:[#allocation7 + $0x11c] sm:$0xf]
    %v3240 = vld [vmem:[#allocation7 + $0x120] sm:$0xf]
    %v3241 = vld [vmem:[#allocation7 + $0x124] sm:$0xf]
    %v3242 = vld [vmem:[#allocation7 + $0x128] sm:$0xf]
    %v3243 = vld [vmem:[#allocation7 + $0x12c] sm:$0xf]
    %v3244 = vld [vmem:[#allocation7 + $0x130] sm:$0xf]
    %v3245 = vld [vmem:[#allocation7 + $0x134] sm:$0xf]
    %v3246 = vld [vmem:[#allocation7 + $0x138] sm:$0xf]
    %v3247 = vld [vmem:[#allocation7 + $0x13c] sm:$0xf]
    %v3248 = vld [vmem:[#allocation7 + $0x140] sm:$0xf]
    %v3249 = vld [vmem:[#allocation7 + $0x144] sm:$0xf]
    %v3250 = vld [vmem:[#allocation7 + $0x148] sm:$0xf]
    %v3251 = vld [vmem:[#allocation7 + $0x14c] sm:$0xf]
    %v3252 = vld [vmem:[#allocation7 + $0x150] sm:$0xf]
    %v3253 = vld [vmem:[#allocation7 + $0x154] sm:$0xf]
    %v3254 = vld [vmem:[#allocation7 + $0x158] sm:$0xf]
    %v3255 = vld [vmem:[#allocation7 + $0x15c] sm:$0xf]
    %v3256 = vld [vmem:[#allocation7 + $0x160] sm:$0xf]
    %v3257 = vld [vmem:[#allocation7 + $0x164] sm:$0xf]
    %v3258 = vld [vmem:[#allocation7 + $0x168] sm:$0xf]
    %v3259 = vld [vmem:[#allocation7 + $0x16c] sm:$0xf]
    %v3260 = vld [vmem:[#allocation7 + $0x170] sm:$0xf]
    %v3261 = vld [vmem:[#allocation7 + $0x174] sm:$0xf]
    %v3262 = vld [vmem:[#allocation7 + $0x178] sm:$0xf]
    %v3263 = vld [vmem:[#allocation7 + $0x17c] sm:$0xf]
    %v3264 = vld [vmem:[#allocation7 + $0x180] sm:$0xf]
    %v3265 = vld [vmem:[#allocation7 + $0x184] sm:$0xf]
    %v3266 = vld [vmem:[#allocation7 + $0x188] sm:$0xf]
    %v3267 = vld [vmem:[#allocation7 + $0x18c] sm:$0xf]
    %v3268 = vld [vmem:[#allocation7 + $0x190] sm:$0xf]
    %v3269 = vld [vmem:[#allocation7 + $0x194] sm:$0xf]
    %v3270 = vld [vmem:[#allocation7 + $0x198] sm:$0xf]
    %v3271 = vld [vmem:[#allocation7 + $0x19c] sm:$0xf]
    %v3272 = vld [vmem:[#allocation7 + $0x1a0] sm:$0xf]
    %v3273 = vld [vmem:[#allocation7 + $0x1a4] sm:$0xf]
    %v3274 = vld [vmem:[#allocation7 + $0x1a8] sm:$0xf]
    %v3275 = vld [vmem:[#allocation7 + $0x1ac] sm:$0xf]
    %v3276 = vld [vmem:[#allocation7 + $0x1b0] sm:$0xf]
    %v3277 = vld [vmem:[#allocation7 + $0x1b4] sm:$0xf]
    %v3278 = vld [vmem:[#allocation7 + $0x1b8] sm:$0xf]
    %v3279 = vld [vmem:[#allocation7 + $0x1bc] sm:$0xf]
    %v3280 = vld [vmem:[#allocation7 + $0x1c0] sm:$0xf]
    %v3281 = vld [vmem:[#allocation7 + $0x1c4] sm:$0xf]
    %v3282 = vld [vmem:[#allocation7 + $0x1c8] sm:$0xf]
    %v3283 = vld [vmem:[#allocation7 + $0x1cc] sm:$0xf]
    %v3284 = vld [vmem:[#allocation7 + $0x1d0] sm:$0xf]
    %v3285 = vld [vmem:[#allocation7 + $0x1d4] sm:$0xf]
    %v3286 = vld [vmem:[#allocation7 + $0x1d8] sm:$0xf]
    %v3287 = vld [vmem:[#allocation7 + $0x1dc] sm:$0xf]
    %v3288 = vld [vmem:[#allocation7 + $0x1e0] sm:$0xf]
    %v3289 = vld [vmem:[#allocation7 + $0x1e4] sm:$0xf]
    %v3290 = vld [vmem:[#allocation7 + $0x1e8] sm:$0xf]
    %v3291 = vld [vmem:[#allocation7 + $0x1ec] sm:$0xf]
    %v3292 = vld [vmem:[#allocation7 + $0x1f0] sm:$0xf]
    %v3293 = vld [vmem:[#allocation7 + $0x1f4] sm:$0xf]
    %v3294 = vld [vmem:[#allocation7 + $0x1f8] sm:$0xf]
    %v3295 = vld [vmem:[#allocation7 + $0x1fc] sm:$0xf]
    %v3424 = vunpack.c.l.b16 %v3168
    %v3425 = vunpack.c.l.b16 %v3169
    %v3426 = vunpack.c.l.b16 %v3170
    %v3427 = vunpack.c.l.b16 %v3171
    %v3428 = vunpack.c.l.b16 %v3172
    %v3429 = vunpack.c.l.b16 %v3173
    %v3430 = vunpack.c.l.b16 %v3174
    %v3431 = vunpack.c.l.b16 %v3175
    %v3432 = vunpack.c.l.b16 %v3176
    %v3433 = vunpack.c.l.b16 %v3177
    %v3434 = vunpack.c.l.b16 %v3178
    %v3435 = vunpack.c.l.b16 %v3179
    %v3436 = vunpack.c.l.b16 %v3180
    %v3437 = vunpack.c.l.b16 %v3181
    %v3438 = vunpack.c.l.b16 %v3182
    %v3439 = vunpack.c.l.b16 %v3183
    %v3440 = vunpack.c.l.b16 %v3184
    %v3441 = vunpack.c.l.b16 %v3185
    %v3442 = vunpack.c.l.b16 %v3186
    %v3443 = vunpack.c.l.b16 %v3187
    %v3444 = vunpack.c.l.b16 %v3188
    %v3445 = vunpack.c.l.b16 %v3189
    %v3446 = vunpack.c.l.b16 %v3190
    %v3447 = vunpack.c.l.b16 %v3191
    %v3448 = vunpack.c.l.b16 %v3192
    %v3449 = vunpack.c.l.b16 %v3193
    %v3450 = vunpack.c.l.b16 %v3194
    %v3451 = vunpack.c.l.b16 %v3195
    %v3452 = vunpack.c.l.b16 %v3196
    %v3453 = vunpack.c.l.b16 %v3197
    %v3454 = vunpack.c.l.b16 %v3198
    %v3455 = vunpack.c.l.b16 %v3199
    %v3456 = vunpack.c.l.b16 %v3200
    %v3457 = vunpack.c.l.b16 %v3201
    %v3458 = vunpack.c.l.b16 %v3202
    %v3459 = vunpack.c.l.b16 %v3203
    %v3460 = vunpack.c.l.b16 %v3204
    %v3461 = vunpack.c.l.b16 %v3205
    %v3462 = vunpack.c.l.b16 %v3206
    %v3463 = vunpack.c.l.b16 %v3207
    %v3464 = vunpack.c.l.b16 %v3208
    %v3465 = vunpack.c.l.b16 %v3209
    %v3466 = vunpack.c.l.b16 %v3210
    %v3467 = vunpack.c.l.b16 %v3211
    %v3468 = vunpack.c.l.b16 %v3212
    %v3469 = vunpack.c.l.b16 %v3213
    %v3470 = vunpack.c.l.b16 %v3214
    %v3471 = vunpack.c.l.b16 %v3215
    %v3472 = vunpack.c.l.b16 %v3216
    %v3473 = vunpack.c.l.b16 %v3217
    %v3474 = vunpack.c.l.b16 %v3218
    %v3475 = vunpack.c.l.b16 %v3219
    %v3476 = vunpack.c.l.b16 %v3220
    %v3477 = vunpack.c.l.b16 %v3221
    %v3478 = vunpack.c.l.b16 %v3222
    %v3479 = vunpack.c.l.b16 %v3223
    %v3480 = vunpack.c.l.b16 %v3224
    %v3481 = vunpack.c.l.b16 %v3225
    %v3482 = vunpack.c.l.b16 %v3226
    %v3483 = vunpack.c.l.b16 %v3227
    %v3484 = vunpack.c.l.b16 %v3228
    %v3485 = vunpack.c.l.b16 %v3229
    %v3486 = vunpack.c.l.b16 %v3230
    %v3487 = vunpack.c.l.b16 %v3231
    %v3488 = vunpack.c.l.b16 %v3232
    %v3489 = vunpack.c.l.b16 %v3233
    %v3490 = vunpack.c.l.b16 %v3234
    %v3491 = vunpack.c.l.b16 %v3235
    %v3492 = vunpack.c.l.b16 %v3236
    %v3493 = vunpack.c.l.b16 %v3237
    %v3494 = vunpack.c.l.b16 %v3238
    %v3495 = vunpack.c.l.b16 %v3239
    %v3496 = vunpack.c.l.b16 %v3240
    %v3497 = vunpack.c.l.b16 %v3241
    %v3498 = vunpack.c.l.b16 %v3242
    %v3499 = vunpack.c.l.b16 %v3243
    %v3500 = vunpack.c.l.b16 %v3244
    %v3501 = vunpack.c.l.b16 %v3245
    %v3502 = vunpack.c.l.b16 %v3246
    %v3503 = vunpack.c.l.b16 %v3247
    %v3504 = vunpack.c.l.b16 %v3248
    %v3505 = vunpack.c.l.b16 %v3249
    %v3506 = vunpack.c.l.b16 %v3250
    %v3507 = vunpack.c.l.b16 %v3251
    %v3508 = vunpack.c.l.b16 %v3252
    %v3509 = vunpack.c.l.b16 %v3253
    %v3510 = vunpack.c.l.b16 %v3254
    %v3511 = vunpack.c.l.b16 %v3255
    %v3512 = vunpack.c.l.b16 %v3256
    %v3513 = vunpack.c.l.b16 %v3257
    %v3514 = vunpack.c.l.b16 %v3258
    %v3515 = vunpack.c.l.b16 %v3259
    %v3516 = vunpack.c.l.b16 %v3260
    %v3517 = vunpack.c.l.b16 %v3261
    %v3518 = vunpack.c.l.b16 %v3262
    %v3519 = vunpack.c.l.b16 %v3263
    %v3520 = vunpack.c.l.b16 %v3264
    %v3521 = vunpack.c.l.b16 %v3265
    %v3522 = vunpack.c.l.b16 %v3266
    %v3523 = vunpack.c.l.b16 %v3267
    %v3524 = vunpack.c.l.b16 %v3268
    %v3525 = vunpack.c.l.b16 %v3269
    %v3526 = vunpack.c.l.b16 %v3270
    %v3527 = vunpack.c.l.b16 %v3271
    %v3528 = vunpack.c.l.b16 %v3272
    %v3529 = vunpack.c.l.b16 %v3273
    %v3530 = vunpack.c.l.b16 %v3274
    %v3531 = vunpack.c.l.b16 %v3275
    %v3532 = vunpack.c.l.b16 %v3276
    %v3533 = vunpack.c.l.b16 %v3277
    %v3534 = vunpack.c.l.b16 %v3278
    %v3535 = vunpack.c.l.b16 %v3279
    %v3536 = vunpack.c.l.b16 %v3280
    %v3537 = vunpack.c.l.b16 %v3281
    %v3538 = vunpack.c.l.b16 %v3282
    %v3539 = vunpack.c.l.b16 %v3283
    %v3540 = vunpack.c.l.b16 %v3284
    %v3541 = vunpack.c.l.b16 %v3285
    %v3542 = vunpack.c.l.b16 %v3286
    %v3543 = vunpack.c.l.b16 %v3287
    %v3544 = vunpack.c.l.b16 %v3288
    %v3545 = vunpack.c.l.b16 %v3289
    %v3546 = vunpack.c.l.b16 %v3290
    %v3547 = vunpack.c.l.b16 %v3291
    %v3548 = vunpack.c.l.b16 %v3292
    %v3549 = vunpack.c.l.b16 %v3293
    %v3550 = vunpack.c.l.b16 %v3294
    %v3551 = vunpack.c.l.b16 %v3295
    %v3552 = vpack.c.b16 %v3425, %v3424
    %v3553 = vpack.c.b16 %v3427, %v3426
    %v3554 = vpack.c.b16 %v3429, %v3428
    %v3555 = vpack.c.b16 %v3431, %v3430
    %v3556 = vpack.c.b16 %v3433, %v3432
    %v3557 = vpack.c.b16 %v3435, %v3434
    %v3558 = vpack.c.b16 %v3437, %v3436
    %v3559 = vpack.c.b16 %v3439, %v3438
    %v3560 = vpack.c.b16 %v3441, %v3440
    %v3561 = vpack.c.b16 %v3443, %v3442
    %v3562 = vpack.c.b16 %v3445, %v3444
    %v3563 = vpack.c.b16 %v3447, %v3446
    %v3564 = vpack.c.b16 %v3449, %v3448
    %v3565 = vpack.c.b16 %v3451, %v3450
    %v3566 = vpack.c.b16 %v3453, %v3452
    %v3567 = vpack.c.b16 %v3455, %v3454
    %v3568 = vpack.c.b16 %v3457, %v3456
    %v3569 = vpack.c.b16 %v3459, %v3458
    %v3570 = vpack.c.b16 %v3461, %v3460
    %v3571 = vpack.c.b16 %v3463, %v3462
    %v3572 = vpack.c.b16 %v3465, %v3464
    %v3573 = vpack.c.b16 %v3467, %v3466
    %v3574 = vpack.c.b16 %v3469, %v3468
    %v3575 = vpack.c.b16 %v3471, %v3470
    %v3576 = vpack.c.b16 %v3473, %v3472
    %v3577 = vpack.c.b16 %v3475, %v3474
    %v3578 = vpack.c.b16 %v3477, %v3476
    %v3579 = vpack.c.b16 %v3479, %v3478
    %v3580 = vpack.c.b16 %v3481, %v3480
    %v3581 = vpack.c.b16 %v3483, %v3482
    %v3582 = vpack.c.b16 %v3485, %v3484
    %v3583 = vpack.c.b16 %v3487, %v3486
    %v3584 = vpack.c.b16 %v3489, %v3488
    %v3585 = vpack.c.b16 %v3491, %v3490
    %v3586 = vpack.c.b16 %v3493, %v3492
    %v3587 = vpack.c.b16 %v3495, %v3494
    %v3588 = vpack.c.b16 %v3497, %v3496
    %v3589 = vpack.c.b16 %v3499, %v3498
    %v3590 = vpack.c.b16 %v3501, %v3500
    %v3591 = vpack.c.b16 %v3503, %v3502
    %v3592 = vpack.c.b16 %v3505, %v3504
    %v3593 = vpack.c.b16 %v3507, %v3506
    %v3594 = vpack.c.b16 %v3509, %v3508
    %v3595 = vpack.c.b16 %v3511, %v3510
    %v3596 = vpack.c.b16 %v3513, %v3512
    %v3597 = vpack.c.b16 %v3515, %v3514
    %v3598 = vpack.c.b16 %v3517, %v3516
    %v3599 = vpack.c.b16 %v3519, %v3518
    %v3600 = vpack.c.b16 %v3521, %v3520
    %v3601 = vpack.c.b16 %v3523, %v3522
    %v3602 = vpack.c.b16 %v3525, %v3524
    %v3603 = vpack.c.b16 %v3527, %v3526
    %v3604 = vpack.c.b16 %v3529, %v3528
    %v3605 = vpack.c.b16 %v3531, %v3530
    %v3606 = vpack.c.b16 %v3533, %v3532
    %v3607 = vpack.c.b16 %v3535, %v3534
    %v3608 = vpack.c.b16 %v3537, %v3536
    %v3609 = vpack.c.b16 %v3539, %v3538
    %v3610 = vpack.c.b16 %v3541, %v3540
    %v3611 = vpack.c.b16 %v3543, %v3542
    %v3612 = vpack.c.b16 %v3545, %v3544
    %v3613 = vpack.c.b16 %v3547, %v3546
    %v3614 = vpack.c.b16 %v3549, %v3548
    %v3615 = vpack.c.b16 %v3551, %v3550
    %3680 = vmatprep.subr.bf16.mxu0 0
    %3681 = vmatpush1.bf16.msra.mxu0 %v3552
    %3682 = vmatprep.subr.bf16.mxu0 0
    %3683 = vmatpush1.bf16.msra.mxu0 %v3553
    %3684 = vmatprep.subr.bf16.mxu0 0
    %3685 = vmatpush1.bf16.msra.mxu0 %v3554
    %3686 = vmatprep.subr.bf16.mxu0 0
    %3687 = vmatpush1.bf16.msra.mxu0 %v3555
    %3688 = vmatprep.subr.bf16.mxu0 0
    %3689 = vmatpush1.bf16.msra.mxu0 %v3556
    %3690 = vmatprep.subr.bf16.mxu0 0
    %3691 = vmatpush1.bf16.msra.mxu0 %v3557
    %3692 = vmatprep.subr.bf16.mxu0 0
    %3693 = vmatpush1.bf16.msra.mxu0 %v3558
    %3694 = vmatprep.subr.bf16.mxu0 0
    %3695 = vmatpush1.bf16.msra.mxu0 %v3559
    %3696 = vmatprep.subr.bf16.mxu0 0
    %3697 = vmatpush1.bf16.msra.mxu0 %v3560
    %3698 = vmatprep.subr.bf16.mxu0 0
    %3699 = vmatpush1.bf16.msra.mxu0 %v3561
    %3700 = vmatprep.subr.bf16.mxu0 0
    %3701 = vmatpush1.bf16.msra.mxu0 %v3562
    %3702 = vmatprep.subr.bf16.mxu0 0
    %3703 = vmatpush1.bf16.msra.mxu0 %v3563
    %3704 = vmatprep.subr.bf16.mxu0 0
    %3705 = vmatpush1.bf16.msra.mxu0 %v3564
    %3706 = vmatprep.subr.bf16.mxu0 0
    %3707 = vmatpush1.bf16.msra.mxu0 %v3565
    %3708 = vmatprep.subr.bf16.mxu0 0
    %3709 = vmatpush1.bf16.msra.mxu0 %v3566
    %3710 = vmatprep.subr.bf16.mxu0 0
    %3711 = vmatpush1.bf16.msra.mxu0 %v3567
    %3712 = vmatprep.mubr.bf16.mxu0 %v3161
    %3713 = vmatmul.mubr.bf16.gmra.mrb[0].mxu0 %v3160
    %v3714 = vpop.f32.mrb[0].mxu0
    %v3715 = vadd.f32 0.0, %v3714
    %v3716 = vpop.f32.mrb[0].mxu0
    %v3717 = vpop.f32.mrb[0].mxu0
    %v3718 = vadd.f32 0.0, %v3717
    %v3719 = vpop.f32.mrb[0].mxu0
    %3720 = vdwg.mxu0
    %3721 = vmatprep.subr.bf16.mxu0 0
    %3722 = vmatpush1.bf16.msra.mxu0 %v3568
    %3723 = vmatprep.subr.bf16.mxu0 0
    %3724 = vmatpush1.bf16.msra.mxu0 %v3569
    %3725 = vmatprep.subr.bf16.mxu0 0
    %3726 = vmatpush1.bf16.msra.mxu0 %v3570
    %3727 = vmatprep.subr.bf16.mxu0 0
    %3728 = vmatpush1.bf16.msra.mxu0 %v3571
    %3729 = vmatprep.subr.bf16.mxu0 0
    %3730 = vmatpush1.bf16.msra.mxu0 %v3572
    %3731 = vmatprep.subr.bf16.mxu0 0
    %3732 = vmatpush1.bf16.msra.mxu0 %v3573
    %3733 = vmatprep.subr.bf16.mxu0 0
    %3734 = vmatpush1.bf16.msra.mxu0 %v3574
    %3735 = vmatprep.subr.bf16.mxu0 0
    %3736 = vmatpush1.bf16.msra.mxu0 %v3575
    %3737 = vmatprep.subr.bf16.mxu0 0
    %3738 = vmatpush1.bf16.msra.mxu0 %v3576
    %3739 = vmatprep.subr.bf16.mxu0 0
    %3740 = vmatpush1.bf16.msra.mxu0 %v3577
    %3741 = vmatprep.subr.bf16.mxu0 0
    %3742 = vmatpush1.bf16.msra.mxu0 %v3578
    %3743 = vmatprep.subr.bf16.mxu0 0
    %3744 = vmatpush1.bf16.msra.mxu0 %v3579
    %3745 = vmatprep.subr.bf16.mxu0 0
    %3746 = vmatpush1.bf16.msra.mxu0 %v3580
    %3747 = vmatprep.subr.bf16.mxu0 0
    %3748 = vmatpush1.bf16.msra.mxu0 %v3581
    %3749 = vmatprep.subr.bf16.mxu0 0
    %3750 = vmatpush1.bf16.msra.mxu0 %v3582
    %3751 = vmatprep.subr.bf16.mxu0 0
    %3752 = vmatpush1.bf16.msra.mxu0 %v3583
    %3753 = vmatprep.mubr.bf16.mxu0 %v3163
    %3754 = vmatmul.mubr.bf16.gmra.mrb[0].mxu0 %v3162
    %v3755 = vpop.f32.mrb[0].mxu0
    %v3756 = vadd.f32 %v3715, %v3755
    %v3757 = vpop.f32.mrb[0].mxu0
    %v3758 = vpop.f32.mrb[0].mxu0
    %v3759 = vadd.f32 %v3718, %v3758
    %v3760 = vpop.f32.mrb[0].mxu0
    %3761 = vdwg.mxu0
    %3762 = vmatprep.subr.bf16.mxu0 0
    %3763 = vmatpush1.bf16.msra.mxu0 %v3584
    %3764 = vmatprep.subr.bf16.mxu0 0
    %3765 = vmatpush1.bf16.msra.mxu0 %v3585
    %3766 = vmatprep.subr.bf16.mxu0 0
    %3767 = vmatpush1.bf16.msra.mxu0 %v3586
    %3768 = vmatprep.subr.bf16.mxu0 0
    %3769 = vmatpush1.bf16.msra.mxu0 %v3587
    %3770 = vmatprep.subr.bf16.mxu0 0
    %3771 = vmatpush1.bf16.msra.mxu0 %v3588
    %3772 = vmatprep.subr.bf16.mxu0 0
    %3773 = vmatpush1.bf16.msra.mxu0 %v3589
    %3774 = vmatprep.subr.bf16.mxu0 0
    %3775 = vmatpush1.bf16.msra.mxu0 %v3590
    %3776 = vmatprep.subr.bf16.mxu0 0
    %3777 = vmatpush1.bf16.msra.mxu0 %v3591
    %3778 = vmatprep.subr.bf16.mxu0 0
    %3779 = vmatpush1.bf16.msra.mxu0 %v3592
    %3780 = vmatprep.subr.bf16.mxu0 0
    %3781 = vmatpush1.bf16.msra.mxu0 %v3593
    %3782 = vmatprep.subr.bf16.mxu0 0
    %3783 = vmatpush1.bf16.msra.mxu0 %v3594
    %3784 = vmatprep.subr.bf16.mxu0 0
    %3785 = vmatpush1.bf16.msra.mxu0 %v3595
    %3786 = vmatprep.subr.bf16.mxu0 0
    %3787 = vmatpush1.bf16.msra.mxu0 %v3596
    %3788 = vmatprep.subr.bf16.mxu0 0
    %3789 = vmatpush1.bf16.msra.mxu0 %v3597
    %3790 = vmatprep.subr.bf16.mxu0 0
    %3791 = vmatpush1.bf16.msra.mxu0 %v3598
    %3792 = vmatprep.subr.bf16.mxu0 0
    %3793 = vmatpush1.bf16.msra.mxu0 %v3599
    %3794 = vmatprep.mubr.bf16.mxu0 %v3165
    %3795 = vmatmul.mubr.bf16.gmra.mrb[0].mxu0 %v3164
    %v3796 = vpop.f32.mrb[0].mxu0
    %v3797 = vadd.f32 %v3756, %v3796
    %v3798 = vpop.f32.mrb[0].mxu0
    %v3799 = vpop.f32.mrb[0].mxu0
    %v3800 = vadd.f32 %v3759, %v3799
    %v3801 = vpop.f32.mrb[0].mxu0
    %3802 = vdwg.mxu0
    %3803 = vmatprep.subr.bf16.mxu0 0
    %3804 = vmatpush1.bf16.msra.mxu0 %v3600
    %3805 = vmatprep.subr.bf16.mxu0 0
    %3806 = vmatpush1.bf16.msra.mxu0 %v3601
    %3807 = vmatprep.subr.bf16.mxu0 0
    %3808 = vmatpush1.bf16.msra.mxu0 %v3602
    %3809 = vmatprep.subr.bf16.mxu0 0
    %3810 = vmatpush1.bf16.msra.mxu0 %v3603
    %3811 = vmatprep.subr.bf16.mxu0 0
    %3812 = vmatpush1.bf16.msra.mxu0 %v3604
    %3813 = vmatprep.subr.bf16.mxu0 0
    %3814 = vmatpush1.bf16.msra.mxu0 %v3605
    %3815 = vmatprep.subr.bf16.mxu0 0
    %3816 = vmatpush1.bf16.msra.mxu0 %v3606
    %3817 = vmatprep.subr.bf16.mxu0 0
    %3818 = vmatpush1.bf16.msra.mxu0 %v3607
    %3819 = vmatprep.subr.bf16.mxu0 0
    %3820 = vmatpush1.bf16.msra.mxu0 %v3608
    %3821 = vmatprep.subr.bf16.mxu0 0
    %3822 = vmatpush1.bf16.msra.mxu0 %v3609
    %3823 = vmatprep.subr.bf16.mxu0 0
    %3824 = vmatpush1.bf16.msra.mxu0 %v3610
    %3825 = vmatprep.subr.bf16.mxu0 0
    %3826 = vmatpush1.bf16.msra.mxu0 %v3611
    %3827 = vmatprep.subr.bf16.mxu0 0
    %3828 = vmatpush1.bf16.msra.mxu0 %v3612
    %3829 = vmatprep.subr.bf16.mxu0 0
    %3830 = vmatpush1.bf16.msra.mxu0 %v3613
    %3831 = vmatprep.subr.bf16.mxu0 0
    %3832 = vmatpush1.bf16.msra.mxu0 %v3614
    %3833 = vmatprep.subr.bf16.mxu0 0
    %3834 = vmatpush1.bf16.msra.mxu0 %v3615
    %3835 = vmatprep.mubr.bf16.mxu0 %v3167
    %3836 = vmatmul.mubr.bf16.gmra.mrb[0].mxu0 %v3166
    %v3837 = vpop.f32.mrb[0].mxu0
    %v3838 = vadd.f32 %v3797, %v3837
    %v3839 = vpop.f32.mrb[0].mxu0
    %v3840 = vpop.f32.mrb[0].mxu0
    %v3841 = vadd.f32 %v3800, %v3840
    %v3842 = vpop.f32.mrb[0].mxu0
    %3843 = vdwg.mxu0
    %3844 = vst [vmem:[#allocation8] sm:$0xff] %v3838
    %3845 = vst [vmem:[#allocation8 + $0x8] sm:$0xff] %v3841
    // Predicated region
    $region26: #{tpu_custom_call.1} parent=1 // pred_check
      _
    $region27: #{tpu_custom_call.1} parent=1 // pred_check_branch
      %3847 = sbr.rel (0) target = $region29
    $region28: #{tpu_custom_call.1} parent=1 // pred_region
      %s3849 = ssub.s32 256, 256
      %3850 = vsyncadd [#allocation4], %s3849
      %s3851 = sshll.u32 [#allocation8], 4
      %s3852 = int_to_ptr.vmem [resolvable:$true] %s3851
      %3857 = dma.vmem_to_hbm [thread:$0]  %s3852, 256, %s3, [#allocation4], 128, 128, 8
    $region29: #{tpu_custom_call.1} parent=1 // pred_fallthru
      _
    // Predicated region
    $region30: #{tpu_custom_call.1} parent=1 // pred_check
      _
    $region31: #{tpu_custom_call.1} parent=1 // pred_check_branch
      %3859 = sbr.rel (0) target = $region33
    $region32: #{tpu_custom_call.1} parent=1 // pred_region
      %3860 = dma.done [#allocation4], 256
    $region33: #{tpu_custom_call.1} parent=1 // pred_fallthru
      _
    %3861 = vsyncpa [#allocation3], 1
    %3862 = vsyncpa [#allocation6], 1
    %3863 = vsyncpa [#allocation4], 1

</llo_original>
